<compile_context>
chip_gen: v7x
topology: tpu7x:2x2x1
jax: 0.10.0
libtpu: 0.0.40
codegen_flags: <defaults>
</compile_context>

<pallas_src>
import functools

import jax
import jax.numpy as jnp
from jax import lax
from jax.experimental import pallas as pl
from jax.experimental.pallas import tpu as pltpu


def _dwconv3x3_kernel(x_ref, w_ref, o_ref, xp_ref, *, th):
    # x_ref : (CB, H, W)      one channel tile of the input (auto-pipelined)
    # w_ref : (CB, 3, 3)      per-channel 3x3 taps
    # o_ref : (CB, H, W)      output channel tile
    # xp_ref: (CB, H+2, W+2)  VMEM scratch holding the zero-padded tile
    cb, H, W = o_ref.shape

    # Build the zero halo entirely in VMEM (no HBM pad pass): zero the scratch,
    # then drop the unpadded block into its interior.
    xp_ref[...] = jnp.zeros_like(xp_ref)
    xp_ref[:, 1:H + 1, 1:W + 1] = x_ref[...]

    num_bands = H // th
    for b in range(num_bands):
        r0 = b * th
        # Register-resident accumulator for one band of `th` output rows.
        acc = jnp.zeros((cb, th, W), jnp.float32)
        for kh in range(3):
            for kw in range(3):
                # Output row i / col j uses padded row i+kh / padded col j+kw.
                tap = xp_ref[:, r0 + kh:r0 + kh + th, kw:kw + W].astype(jnp.float32)
                wgt = w_ref[:, kh:kh + 1, kw:kw + 1].astype(jnp.float32)  # (CB,1,1)
                acc = acc + tap * wgt
        o_ref[:, r0:r0 + th, :] = acc.astype(o_ref.dtype)


def depthwise_conv3x3(x_nchw, weight_oihw):
    """Depthwise 3x3 conv, stride 1, padding 1, no bias.

    x_nchw:      (N, C, H, W) float32
    weight_oihw: (C, 1, 3, 3) float32  (PyTorch depthwise layout)
    returns      (N, C, H, W) float32
    """
    N, C, H, W = x_nchw.shape
    assert weight_oihw.shape == (C, 1, 3, 3)

    # Channel tile: CB=16 -> 9 pipelined grid steps for C=144.
    cb = next(c for c in (16, 8, 4, 2, 1) if C % c == 0)
    # Row band processed per inner iteration (sublane-aligned).
    th = 8 if H % 8 == 0 else H

    w_c33 = weight_oihw.reshape(C, 3, 3)  # free reshape, no transpose

    kernel = functools.partial(_dwconv3x3_kernel, th=th)

    return pl.pallas_call(
        kernel,
        out_shape=jax.ShapeDtypeStruct((N, C, H, W), x_nchw.dtype),
        grid_spec=pltpu.PrefetchScalarGridSpec(
            num_scalar_prefetch=0,
            grid=(N, C // cb),
            in_specs=[
                # One (1, CB, H, W) tile; batch dim squeezed out of the kernel.
                pl.BlockSpec((None, cb, H, W), lambda n, c: (n, c, 0, 0)),
                # Matching channel slice of the weights.
                pl.BlockSpec((cb, 3, 3), lambda n, c: (c, 0, 0)),
            ],
            out_specs=pl.BlockSpec((None, cb, H, W), lambda n, c: (n, c, 0, 0)),
            scratch_shapes=[pltpu.VMEM((cb, H + 2, W + 2), jnp.float32)],
        ),
        compiler_params=pltpu.CompilerParams(
            dimension_semantics=("parallel", "parallel")),
    )(x_nchw, w_c33)


if __name__ == "__main__":
    # Channel count fixed by the module (144); spatial size reduced 56 -> 16
    # for a quick run.
    N, C, H, W = 1, 144, 16, 16

    key = jax.random.PRNGKey(0)
    kx, kw = jax.random.split(key)
    x = jax.random.normal(kx, (N, C, H, W), dtype=jnp.float32)
    weight = jax.random.normal(kw, (C, 1, 3, 3), dtype=jnp.float32) * 0.1

    out = depthwise_conv3x3(x, weight)
    out = jax.block_until_ready(out)

    # Sanity check against XLA's grouped convolution.
    ref = lax.conv_general_dilated(
        x, weight,
        window_strides=(1, 1), padding=((1, 1), (1, 1)),
        dimension_numbers=("NCHW", "OIHW", "NCHW"),
        feature_group_count=C)
    assert out.shape == (N, C, H, W)
    assert jnp.allclose(out, ref, atol=1e-4, rtol=1e-4)

    print("KERNEL_OK")
</pallas_src>

<mosaic_0001>
module attributes {stable_mosaic.version = 11 : i64} {
  func.func @_dwconv3x3_kernel(%arg0: i32, %arg1: i32, %arg2: memref<1x16x16x16xf32, #tpu.memory_space<vmem>>, %arg3: memref<16x3x3xf32, #tpu.memory_space<vmem>>, %arg4: memref<1x16x16x16xf32, #tpu.memory_space<vmem>>, %arg5: memref<16x18x18xf32, #tpu.memory_space<vmem>>) attributes {dimension_semantics = [#tpu.dimension_semantics<parallel>, #tpu.dimension_semantics<parallel>], iteration_bounds = array<i64: 1, 9>, scalar_prefetch = 0 : i64, scratch_operands = 1 : i64, tpu.core_type = #tpu.core_type<tc>, window_params = [{transform_indices = @transform_0, window_bounds = array<i64: 1, 16, 16, 16>}, {transform_indices = @transform_1, window_bounds = array<i64: 16, 3, 3>}, {transform_indices = @transform_2, window_bounds = array<i64: 1, 16, 16, 16>}]} {
    %cst = arith.constant 0.000000e+00 : f32
    %0 = vector.broadcast %cst : f32 to vector<16x18x18xf32>
    %c0 = arith.constant 0 : index
    %c0_0 = arith.constant 0 : index
    %c0_1 = arith.constant 0 : index
    %1 = vector.load %arg5[%c0, %c0_0, %c0_1] : memref<16x18x18xf32, #tpu.memory_space<vmem>>, vector<16x18x18xf32>
    tpu.vector_store %arg5[%c0, %c0_0, %c0_1], %0 {strides = array<i32>} : memref<16x18x18xf32, #tpu.memory_space<vmem>>, vector<16x18x18xf32>,
    %c0_2 = arith.constant 0 : index
    %c0_3 = arith.constant 0 : index
    %c0_4 = arith.constant 0 : index
    %c0_5 = arith.constant 0 : index
    %2 = vector.load %arg2[%c0_2, %c0_3, %c0_4, %c0_5] : memref<1x16x16x16xf32, #tpu.memory_space<vmem>>, vector<1x16x16x16xf32>
    %3 = vector.shape_cast %2 : vector<1x16x16x16xf32> to vector<16x16x16xf32>
    %c0_6 = arith.constant 0 : index
    %c1 = arith.constant 1 : index
    %c1_7 = arith.constant 1 : index
    %4 = vector.load %arg5[%c0_6, %c1, %c1_7] : memref<16x18x18xf32, #tpu.memory_space<vmem>>, vector<16x16x16xf32>
    tpu.vector_store %arg5[%c0_6, %c1, %c1_7], %3 {strides = array<i32>} : memref<16x18x18xf32, #tpu.memory_space<vmem>>, vector<16x16x16xf32>,
    %cst_8 = arith.constant 0.000000e+00 : f32
    %5 = vector.broadcast %cst_8 : f32 to vector<16x8x16xf32>
    %c0_9 = arith.constant 0 : index
    %c0_10 = arith.constant 0 : index
    %c0_11 = arith.constant 0 : index
    %6 = vector.load %arg5[%c0_9, %c0_10, %c0_11] : memref<16x18x18xf32, #tpu.memory_space<vmem>>, vector<16x8x16xf32>
    %c0_12 = arith.constant 0 : index
    %c0_13 = arith.constant 0 : index
    %c0_14 = arith.constant 0 : index
    %7 = vector.load %arg3[%c0_12, %c0_13, %c0_14] : memref<16x3x3xf32, #tpu.memory_space<vmem>>, vector<16x1x1xf32>
    %8 = vector.broadcast %7 : vector<16x1x1xf32> to vector<16x8x16xf32>
    %9 = arith.mulf %6, %8 : vector<16x8x16xf32>
    %10 = arith.addf %5, %9 : vector<16x8x16xf32>
    %c0_15 = arith.constant 0 : index
    %c0_16 = arith.constant 0 : index
    %c1_17 = arith.constant 1 : index
    %11 = vector.load %arg5[%c0_15, %c0_16, %c1_17] : memref<16x18x18xf32, #tpu.memory_space<vmem>>, vector<16x8x16xf32>
    %c0_18 = arith.constant 0 : index
    %c0_19 = arith.constant 0 : index
    %c1_20 = arith.constant 1 : index
    %12 = vector.load %arg3[%c0_18, %c0_19, %c1_20] : memref<16x3x3xf32, #tpu.memory_space<vmem>>, vector<16x1x1xf32>
    %13 = vector.broadcast %12 : vector<16x1x1xf32> to vector<16x8x16xf32>
    %14 = arith.mulf %11, %13 : vector<16x8x16xf32>
    %15 = arith.addf %10, %14 : vector<16x8x16xf32>
    %c0_21 = arith.constant 0 : index
    %c0_22 = arith.constant 0 : index
    %c2 = arith.constant 2 : index
    %16 = vector.load %arg5[%c0_21, %c0_22, %c2] : memref<16x18x18xf32, #tpu.memory_space<vmem>>, vector<16x8x16xf32>
    %c0_23 = arith.constant 0 : index
    %c0_24 = arith.constant 0 : index
    %c2_25 = arith.constant 2 : index
    %17 = vector.load %arg3[%c0_23, %c0_24, %c2_25] : memref<16x3x3xf32, #tpu.memory_space<vmem>>, vector<16x1x1xf32>
    %18 = vector.broadcast %17 : vector<16x1x1xf32> to vector<16x8x16xf32>
    %19 = arith.mulf %16, %18 : vector<16x8x16xf32>
    %20 = arith.addf %15, %19 : vector<16x8x16xf32>
    %c0_26 = arith.constant 0 : index
    %c1_27 = arith.constant 1 : index
    %c0_28 = arith.constant 0 : index
    %21 = vector.load %arg5[%c0_26, %c1_27, %c0_28] : memref<16x18x18xf32, #tpu.memory_space<vmem>>, vector<16x8x16xf32>
    %c0_29 = arith.constant 0 : index
    %c1_30 = arith.constant 1 : index
    %c0_31 = arith.constant 0 : index
    %22 = vector.load %arg3[%c0_29, %c1_30, %c0_31] : memref<16x3x3xf32, #tpu.memory_space<vmem>>, vector<16x1x1xf32>
    %23 = vector.broadcast %22 : vector<16x1x1xf32> to vector<16x8x16xf32>
    %24 = arith.mulf %21, %23 : vector<16x8x16xf32>
    %25 = arith.addf %20, %24 : vector<16x8x16xf32>
    %c0_32 = arith.constant 0 : index
    %c1_33 = arith.constant 1 : index
    %c1_34 = arith.constant 1 : index
    %26 = vector.load %arg5[%c0_32, %c1_33, %c1_34] : memref<16x18x18xf32, #tpu.memory_space<vmem>>, vector<16x8x16xf32>
    %c0_35 = arith.constant 0 : index
    %c1_36 = arith.constant 1 : index
    %c1_37 = arith.constant 1 : index
    %27 = vector.load %arg3[%c0_35, %c1_36, %c1_37] : memref<16x3x3xf32, #tpu.memory_space<vmem>>, vector<16x1x1xf32>
    %28 = vector.broadcast %27 : vector<16x1x1xf32> to vector<16x8x16xf32>
    %29 = arith.mulf %26, %28 : vector<16x8x16xf32>
    %30 = arith.addf %25, %29 : vector<16x8x16xf32>
    %c0_38 = arith.constant 0 : index
    %c1_39 = arith.constant 1 : index
    %c2_40 = arith.constant 2 : index
    %31 = vector.load %arg5[%c0_38, %c1_39, %c2_40] : memref<16x18x18xf32, #tpu.memory_space<vmem>>, vector<16x8x16xf32>
    %c0_41 = arith.constant 0 : index
    %c1_42 = arith.constant 1 : index
    %c2_43 = arith.constant 2 : index
    %32 = vector.load %arg3[%c0_41, %c1_42, %c2_43] : memref<16x3x3xf32, #tpu.memory_space<vmem>>, vector<16x1x1xf32>
    %33 = vector.broadcast %32 : vector<16x1x1xf32> to vector<16x8x16xf32>
    %34 = arith.mulf %31, %33 : vector<16x8x16xf32>
    %35 = arith.addf %30, %34 : vector<16x8x16xf32>
    %c0_44 = arith.constant 0 : index
    %c2_45 = arith.constant 2 : index
    %c0_46 = arith.constant 0 : index
    %36 = vector.load %arg5[%c0_44, %c2_45, %c0_46] : memref<16x18x18xf32, #tpu.memory_space<vmem>>, vector<16x8x16xf32>
    %c0_47 = arith.constant 0 : index
    %c2_48 = arith.constant 2 : index
    %c0_49 = arith.constant 0 : index
    %37 = vector.load %arg3[%c0_47, %c2_48, %c0_49] : memref<16x3x3xf32, #tpu.memory_space<vmem>>, vector<16x1x1xf32>
    %38 = vector.broadcast %37 : vector<16x1x1xf32> to vector<16x8x16xf32>
    %39 = arith.mulf %36, %38 : vector<16x8x16xf32>
    %40 = arith.addf %35, %39 : vector<16x8x16xf32>
    %c0_50 = arith.constant 0 : index
    %c2_51 = arith.constant 2 : index
    %c1_52 = arith.constant 1 : index
    %41 = vector.load %arg5[%c0_50, %c2_51, %c1_52] : memref<16x18x18xf32, #tpu.memory_space<vmem>>, vector<16x8x16xf32>
    %c0_53 = arith.constant 0 : index
    %c2_54 = arith.constant 2 : index
    %c1_55 = arith.constant 1 : index
    %42 = vector.load %arg3[%c0_53, %c2_54, %c1_55] : memref<16x3x3xf32, #tpu.memory_space<vmem>>, vector<16x1x1xf32>
    %43 = vector.broadcast %42 : vector<16x1x1xf32> to vector<16x8x16xf32>
    %44 = arith.mulf %41, %43 : vector<16x8x16xf32>
    %45 = arith.addf %40, %44 : vector<16x8x16xf32>
    %c0_56 = arith.constant 0 : index
    %c2_57 = arith.constant 2 : index
    %c2_58 = arith.constant 2 : index
    %46 = vector.load %arg5[%c0_56, %c2_57, %c2_58] : memref<16x18x18xf32, #tpu.memory_space<vmem>>, vector<16x8x16xf32>
    %c0_59 = arith.constant 0 : index
    %c2_60 = arith.constant 2 : index
    %c2_61 = arith.constant 2 : index
    %47 = vector.load %arg3[%c0_59, %c2_60, %c2_61] : memref<16x3x3xf32, #tpu.memory_space<vmem>>, vector<16x1x1xf32>
    %48 = vector.broadcast %47 : vector<16x1x1xf32> to vector<16x8x16xf32>
    %49 = arith.mulf %46, %48 : vector<16x8x16xf32>
    %50 = arith.addf %45, %49 : vector<16x8x16xf32>
    %c0_62 = arith.constant 0 : index
    %c0_63 = arith.constant 0 : index
    %c0_64 = arith.constant 0 : index
    %c0_65 = arith.constant 0 : index
    %51 = vector.load %arg4[%c0_62, %c0_63, %c0_64, %c0_65] : memref<1x16x16x16xf32, #tpu.memory_space<vmem>>, vector<1x16x8x16xf32>
    %52 = vector.shape_cast %51 : vector<1x16x8x16xf32> to vector<16x8x16xf32>
    %53 = vector.shape_cast %50 : vector<16x8x16xf32> to vector<1x16x8x16xf32>
    tpu.vector_store %arg4[%c0_62, %c0_63, %c0_64, %c0_65], %53 {strides = array<i32>} : memref<1x16x16x16xf32, #tpu.memory_space<vmem>>, vector<1x16x8x16xf32>,
    %cst_66 = arith.constant 0.000000e+00 : f32
    %54 = vector.broadcast %cst_66 : f32 to vector<16x8x16xf32>
    %c0_67 = arith.constant 0 : index
    %c8 = arith.constant 8 : index
    %c0_68 = arith.constant 0 : index
    %55 = vector.load %arg5[%c0_67, %c8, %c0_68] : memref<16x18x18xf32, #tpu.memory_space<vmem>>, vector<16x8x16xf32>
    %c0_69 = arith.constant 0 : index
    %c0_70 = arith.constant 0 : index
    %c0_71 = arith.constant 0 : index
    %56 = vector.load %arg3[%c0_69, %c0_70, %c0_71] : memref<16x3x3xf32, #tpu.memory_space<vmem>>, vector<16x1x1xf32>
    %57 = vector.broadcast %56 : vector<16x1x1xf32> to vector<16x8x16xf32>
    %58 = arith.mulf %55, %57 : vector<16x8x16xf32>
    %59 = arith.addf %54, %58 : vector<16x8x16xf32>
    %c0_72 = arith.constant 0 : index
    %c8_73 = arith.constant 8 : index
    %c1_74 = arith.constant 1 : index
    %60 = vector.load %arg5[%c0_72, %c8_73, %c1_74] : memref<16x18x18xf32, #tpu.memory_space<vmem>>, vector<16x8x16xf32>
    %c0_75 = arith.constant 0 : index
    %c0_76 = arith.constant 0 : index
    %c1_77 = arith.constant 1 : index
    %61 = vector.load %arg3[%c0_75, %c0_76, %c1_77] : memref<16x3x3xf32, #tpu.memory_space<vmem>>, vector<16x1x1xf32>
    %62 = vector.broadcast %61 : vector<16x1x1xf32> to vector<16x8x16xf32>
    %63 = arith.mulf %60, %62 : vector<16x8x16xf32>
    %64 = arith.addf %59, %63 : vector<16x8x16xf32>
    %c0_78 = arith.constant 0 : index
    %c8_79 = arith.constant 8 : index
    %c2_80 = arith.constant 2 : index
    %65 = vector.load %arg5[%c0_78, %c8_79, %c2_80] : memref<16x18x18xf32, #tpu.memory_space<vmem>>, vector<16x8x16xf32>
    %c0_81 = arith.constant 0 : index
    %c0_82 = arith.constant 0 : index
    %c2_83 = arith.constant 2 : index
    %66 = vector.load %arg3[%c0_81, %c0_82, %c2_83] : memref<16x3x3xf32, #tpu.memory_space<vmem>>, vector<16x1x1xf32>
    %67 = vector.broadcast %66 : vector<16x1x1xf32> to vector<16x8x16xf32>
    %68 = arith.mulf %65, %67 : vector<16x8x16xf32>
    %69 = arith.addf %64, %68 : vector<16x8x16xf32>
    %c0_84 = arith.constant 0 : index
    %c9 = arith.constant 9 : index
    %c0_85 = arith.constant 0 : index
    %70 = vector.load %arg5[%c0_84, %c9, %c0_85] : memref<16x18x18xf32, #tpu.memory_space<vmem>>, vector<16x8x16xf32>
    %c0_86 = arith.constant 0 : index
    %c1_87 = arith.constant 1 : index
    %c0_88 = arith.constant 0 : index
    %71 = vector.load %arg3[%c0_86, %c1_87, %c0_88] : memref<16x3x3xf32, #tpu.memory_space<vmem>>, vector<16x1x1xf32>
    %72 = vector.broadcast %71 : vector<16x1x1xf32> to vector<16x8x16xf32>
    %73 = arith.mulf %70, %72 : vector<16x8x16xf32>
    %74 = arith.addf %69, %73 : vector<16x8x16xf32>
    %c0_89 = arith.constant 0 : index
    %c9_90 = arith.constant 9 : index
    %c1_91 = arith.constant 1 : index
    %75 = vector.load %arg5[%c0_89, %c9_90, %c1_91] : memref<16x18x18xf32, #tpu.memory_space<vmem>>, vector<16x8x16xf32>
    %c0_92 = arith.constant 0 : index
    %c1_93 = arith.constant 1 : index
    %c1_94 = arith.constant 1 : index
    %76 = vector.load %arg3[%c0_92, %c1_93, %c1_94] : memref<16x3x3xf32, #tpu.memory_space<vmem>>, vector<16x1x1xf32>
    %77 = vector.broadcast %76 : vector<16x1x1xf32> to vector<16x8x16xf32>
    %78 = arith.mulf %75, %77 : vector<16x8x16xf32>
    %79 = arith.addf %74, %78 : vector<16x8x16xf32>
    %c0_95 = arith.constant 0 : index
    %c9_96 = arith.constant 9 : index
    %c2_97 = arith.constant 2 : index
    %80 = vector.load %arg5[%c0_95, %c9_96, %c2_97] : memref<16x18x18xf32, #tpu.memory_space<vmem>>, vector<16x8x16xf32>
    %c0_98 = arith.constant 0 : index
    %c1_99 = arith.constant 1 : index
    %c2_100 = arith.constant 2 : index
    %81 = vector.load %arg3[%c0_98, %c1_99, %c2_100] : memref<16x3x3xf32, #tpu.memory_space<vmem>>, vector<16x1x1xf32>
    %82 = vector.broadcast %81 : vector<16x1x1xf32> to vector<16x8x16xf32>
    %83 = arith.mulf %80, %82 : vector<16x8x16xf32>
    %84 = arith.addf %79, %83 : vector<16x8x16xf32>
    %c0_101 = arith.constant 0 : index
    %c10 = arith.constant 10 : index
    %c0_102 = arith.constant 0 : index
    %85 = vector.load %arg5[%c0_101, %c10, %c0_102] : memref<16x18x18xf32, #tpu.memory_space<vmem>>, vector<16x8x16xf32>
    %c0_103 = arith.constant 0 : index
    %c2_104 = arith.constant 2 : index
    %c0_105 = arith.constant 0 : index
    %86 = vector.load %arg3[%c0_103, %c2_104, %c0_105] : memref<16x3x3xf32, #tpu.memory_space<vmem>>, vector<16x1x1xf32>
    %87 = vector.broadcast %86 : vector<16x1x1xf32> to vector<16x8x16xf32>
    %88 = arith.mulf %85, %87 : vector<16x8x16xf32>
    %89 = arith.addf %84, %88 : vector<16x8x16xf32>
    %c0_106 = arith.constant 0 : index
    %c10_107 = arith.constant 10 : index
    %c1_108 = arith.constant 1 : index
    %90 = vector.load %arg5[%c0_106, %c10_107, %c1_108] : memref<16x18x18xf32, #tpu.memory_space<vmem>>, vector<16x8x16xf32>
    %c0_109 = arith.constant 0 : index
    %c2_110 = arith.constant 2 : index
    %c1_111 = arith.constant 1 : index
    %91 = vector.load %arg3[%c0_109, %c2_110, %c1_111] : memref<16x3x3xf32, #tpu.memory_space<vmem>>, vector<16x1x1xf32>
    %92 = vector.broadcast %91 : vector<16x1x1xf32> to vector<16x8x16xf32>
    %93 = arith.mulf %90, %92 : vector<16x8x16xf32>
    %94 = arith.addf %89, %93 : vector<16x8x16xf32>
    %c0_112 = arith.constant 0 : index
    %c10_113 = arith.constant 10 : index
    %c2_114 = arith.constant 2 : index
    %95 = vector.load %arg5[%c0_112, %c10_113, %c2_114] : memref<16x18x18xf32, #tpu.memory_space<vmem>>, vector<16x8x16xf32>
    %c0_115 = arith.constant 0 : index
    %c2_116 = arith.constant 2 : index
    %c2_117 = arith.constant 2 : index
    %96 = vector.load %arg3[%c0_115, %c2_116, %c2_117] : memref<16x3x3xf32, #tpu.memory_space<vmem>>, vector<16x1x1xf32>
    %97 = vector.broadcast %96 : vector<16x1x1xf32> to vector<16x8x16xf32>
    %98 = arith.mulf %95, %97 : vector<16x8x16xf32>
    %99 = arith.addf %94, %98 : vector<16x8x16xf32>
    %c0_118 = arith.constant 0 : index
    %c0_119 = arith.constant 0 : index
    %c8_120 = arith.constant 8 : index
    %c0_121 = arith.constant 0 : index
    %100 = vector.load %arg4[%c0_118, %c0_119, %c8_120, %c0_121] : memref<1x16x16x16xf32, #tpu.memory_space<vmem>>, vector<1x16x8x16xf32>
    %101 = vector.shape_cast %100 : vector<1x16x8x16xf32> to vector<16x8x16xf32>
    %102 = vector.shape_cast %99 : vector<16x8x16xf32> to vector<1x16x8x16xf32>
    tpu.vector_store %arg4[%c0_118, %c0_119, %c8_120, %c0_121], %102 {strides = array<i32>} : memref<1x16x16x16xf32, #tpu.memory_space<vmem>>, vector<1x16x8x16xf32>,
    return
  }
  func.func @transform_0(%arg0: i32, %arg1: i32) -> (i32, i32, i32, i32) {
    %c0_i32 = arith.constant 0 : i32
    %c0_i32_0 = arith.constant 0 : i32
    %c0_i32_1 = arith.constant 0 : i32
    return %arg0, %arg1, %c0_i32, %c0_i32_0 : i32, i32, i32, i32
  }
  func.func @transform_1(%arg0: i32, %arg1: i32) -> (i32, i32, i32) {
    %c0_i32 = arith.constant 0 : i32
    %c0_i32_0 = arith.constant 0 : i32
    %c0_i32_1 = arith.constant 0 : i32
    return %arg1, %c0_i32, %c0_i32_0 : i32, i32, i32
  }
  func.func @transform_2(%arg0: i32, %arg1: i32) -> (i32, i32, i32, i32) {
    %c0_i32 = arith.constant 0 : i32
    %c0_i32_0 = arith.constant 0 : i32
    %c0_i32_1 = arith.constant 0 : i32
    return %arg0, %arg1, %c0_i32, %c0_i32_0 : i32, i32, i32, i32
  }
}

</mosaic_0001>

<llo_original>
// kernel: tpu_custom_call.1
$region0: #{tpu_custom_call.1}
  #allocation0 [shape = 'u32[]', space=smem, size = 0x4, offset = 0x4, fixed_abs, tag = 'smem constant byte address 0x4 - core index']
  #allocation1 [shape = 'u32[144,128]{1,0:T(1,128)}', space=vmem, size = 0x12000, scoped, tag = 'internal scratch']
  #allocation2 [shape = 'f32[16,18,18]{2,1,0:T(8,128)}', space=vmem, size = 0x30000, scoped, tag = 'scratch operand']
  %s0 = inlined_call_operand.vmem [shape: f32[1,144,16,16], index: 0, kind: input, shape index: {}]
  %s1 = inlined_call_operand.vmem [shape: f32[144,3,3], index: 1, kind: input, shape index: {}]
  %s2 = inlined_call_operand.vmem [shape: f32[1,144,16,16], index: 2, kind: output, shape index: {}]
  %s3 = sld [smem:[#allocation0]]
  $region41: #{tpu_custom_call.1} parent=0
    _
  %s5 = ssub.s32 1, %s3
  %s6 = scalar_select 0, %s5, %s3
  loop: start=0, step=1, limit=11
  $region2: #{tpu_custom_call.1} parent=0 // loop_pre_header
    _
  $region3: #{tpu_custom_call.1} parent=0 // loop_header
    %s8 = sphi 0, %s12
    %p9 = scmp.ge.s32.totalorder %s8, 11
    %s15 = sphi 0, %s27
    %s16 = sphi 0, %s23
    %s17 = sphi 0, %s15
    %s18 = sphi 0, %s16
    %s19 = sphi 0, %s17
    %s20 = sphi 0, %s18
    %s32 = sphi 0, %s34
    %s35 = sphi 0, %s32
    %s36 = sphi 0, %s35
    %s52 = sphi 0, %s36
    %s58 = sphi 0, %s60
    %s61 = sphi 0, %s58
    %s62 = sphi 0, %s61
    %s78 = sphi 0, %s62
    %s86 = sphi 0, %s88
    %s89 = sphi 0, %s86
    %s90 = sphi 0, %s89
    %s106 = sphi 0, %s90
  $region4: #{tpu_custom_call.1} parent=0 // loop_header_branch
    %11 = sbr.rel (%p9) target = $region8
  $region5: #{tpu_custom_call.1} parent=0 // loop_body
    %s13 = ssub.s32 %s8, 1
    %s14 = ssub.s32 %s8, 2
    %s21 = sadd.s32 1, %s16
    %p22 = scmp.ge.s32.totalorder %s21, 9
    %s23 = scalar_select %p22, 0, %s21
    %s24 = sadd.s32 1, %s15
    %s25 = scalar_select %p22, %s24, %s15
    %p26 = scmp.ge.s32.totalorder %s25, 1
    %s27 = scalar_select %p26, 0, %s25
    %s28 = ssub.s32 %s15, %s27
    %s29 = ssub.s32 %s16, %s23
    %s30 = sor.u32 %s28, %s29
    %p31 = scmp.eq.s32.totalorder %s30, 0
    %s33 = sadd.s32 %s32, 1
    %s34 = scalar_select %p31, %s32, %s33
    %p37 = pneg %p31
    %p38 = scmp.eq.s32.totalorder %s8, 8
    %p39 = por %p37, %p38
    %p40 = scmp.ne.s32.totalorder %s32, %s35
    %p41 = scmp.eq.s32.totalorder %s8, 0
    %p42 = por %p40, %p41
    %p43 = scmp.ne.s32.totalorder %s32, %s35
    %p44 = scmp.eq.s32.totalorder %s13, 8
    %p45 = por %p43, %p44
    %p46 = scmp.ne.s32.totalorder %s35, %s36
    %p47 = scmp.eq.s32.totalorder %s13, 0
    %p48 = por %p46, %p47
    %p49 = scmp.ne.s32.totalorder %s35, %s36
    %p50 = scmp.eq.s32.totalorder %s14, 8
    %p51 = por %p49, %p50
    %p53 = scmp.ne.s32.totalorder %s36, %s52
    %p54 = scmp.eq.s32.totalorder %s14, 0
    %p55 = por %p53, %p54
    %s56 = ssub.s32 %s16, %s23
    %p57 = scmp.eq.s32.totalorder %s56, 0
    %s59 = sadd.s32 %s58, 1
    %s60 = scalar_select %p57, %s58, %s59
    %p63 = pneg %p57
    %p64 = scmp.eq.s32.totalorder %s8, 8
    %p65 = por %p63, %p64
    %p66 = scmp.ne.s32.totalorder %s58, %s61
    %p67 = scmp.eq.s32.totalorder %s8, 0
    %p68 = por %p66, %p67
    %p69 = scmp.ne.s32.totalorder %s58, %s61
    %p70 = scmp.eq.s32.totalorder %s13, 8
    %p71 = por %p69, %p70
    %p72 = scmp.ne.s32.totalorder %s61, %s62
    %p73 = scmp.eq.s32.totalorder %s13, 0
    %p74 = por %p72, %p73
    %p75 = scmp.ne.s32.totalorder %s61, %s62
    %p76 = scmp.eq.s32.totalorder %s14, 8
    %p77 = por %p75, %p76
    %p79 = scmp.ne.s32.totalorder %s62, %s78
    %p80 = scmp.eq.s32.totalorder %s14, 0
    %p81 = por %p79, %p80
    %s82 = ssub.s32 %s15, %s27
    %s83 = ssub.s32 %s16, %s23
    %s84 = sor.u32 %s82, %s83
    %p85 = scmp.eq.s32.totalorder %s84, 0
    %s87 = sadd.s32 %s86, 1
    %s88 = scalar_select %p85, %s86, %s87
    %p91 = pneg %p85
    %p92 = scmp.eq.s32.totalorder %s8, 8
    %p93 = por %p91, %p92
    %p94 = scmp.ne.s32.totalorder %s86, %s89
    %p95 = scmp.eq.s32.totalorder %s8, 0
    %p96 = por %p94, %p95
    %p97 = scmp.ne.s32.totalorder %s86, %s89
    %p98 = scmp.eq.s32.totalorder %s13, 8
    %p99 = por %p97, %p98
    %p100 = scmp.ne.s32.totalorder %s89, %s90
    %p101 = scmp.eq.s32.totalorder %s13, 0
    %p102 = por %p100, %p101
    %p103 = scmp.ne.s32.totalorder %s89, %s90
    %p104 = scmp.eq.s32.totalorder %s14, 8
    %p105 = por %p103, %p104
    %p107 = scmp.ne.s32.totalorder %s90, %s106
    %p108 = scmp.eq.s32.totalorder %s14, 0
    %p109 = por %p107, %p108
    %p110 = scmp.le.s32.totalorder 1, %s8
    %p111 = scmp.lt.s32.totalorder %s8, 10
    %p112 = pnand %p110, %p111
    %p113 = pneg %p112
    // Predicated region
    $region9: #{tpu_custom_call.1} parent=5 // pred_check
      _
    $region10: #{tpu_custom_call.1} parent=5 // pred_check_branch
      %115 = sbr.rel (%p112) target = $region12
    $region11: #{tpu_custom_call.1} parent=5 // pred_region
      %s116 = ssub.s32 %s8, 1
    $region12: #{tpu_custom_call.1} parent=5 // pred_fallthru
      _
    %p117 = scmp.lt.s32.totalorder %s8, 9
    // Predicated region
    $region13: #{tpu_custom_call.1} parent=5 // pred_check
      %p118 = pneg %p117
    $region14: #{tpu_custom_call.1} parent=5 // pred_check_branch
      %120 = sbr.rel (%p118) target = $region16
    $region15: #{tpu_custom_call.1} parent=5 // pred_region
      // Predicated region
      $region17: #{tpu_custom_call.1} parent=15 // pred_check
        %p121 = pneg %p42
      $region18: #{tpu_custom_call.1} parent=15 // pred_check_branch
        %123 = sbr.rel (%p121) target = $region20
      $region19: #{tpu_custom_call.1} parent=15 // pred_region
        %s124 = smul.u32 16, %s16
        %p125 = scmp.lt.s32.totalorder %s15, 0
        %s126 = scalar_select %p125, %s15, 0
        %p127 = scmp.lt.s32.totalorder %s124, 143
        %s128 = scalar_select %p127, %s124, 143
        %s129 = smul.addr %s128, 2
        %s130 = smul.addr %s126, 288
        %s131 = sadd.s32 %s129, %s130
        %s132 = smul.addr %s131, 8
        %s133 = scalar_lea.vmem %s0, %s132
        %s134 = smul.u32 16, %s16
      $region20: #{tpu_custom_call.1} parent=15 // pred_fallthru
        _
      // Predicated region
      $region21: #{tpu_custom_call.1} parent=15 // pred_check
        %p135 = pneg %p68
      $region22: #{tpu_custom_call.1} parent=15 // pred_check_branch
        %137 = sbr.rel (%p135) target = $region24
      $region23: #{tpu_custom_call.1} parent=15 // pred_region
        %s138 = smul.u32 16, %s16
        %p139 = scmp.lt.s32.totalorder %s138, 143
        %s140 = scalar_select %p139, %s138, 143
        %s141 = smul.addr %s140, 4
        %s142 = scalar_lea.vmem %s1, %s141
        %s143 = smul.u32 16, %s16
      $region24: #{tpu_custom_call.1} parent=15 // pred_fallthru
        _
    $region16: #{tpu_custom_call.1} parent=5 // pred_fallthru
      _
    %p144 = scmp.le.s32.totalorder 1, %s8
    %p145 = scmp.lt.s32.totalorder %s8, 10
    %p146 = pnand %p144, %p145
    %p147 = pneg %p146
    // Predicated region
    $region25: #{tpu_custom_call.1} parent=5 // pred_check
      _
    $region26: #{tpu_custom_call.1} parent=5 // pred_check_branch
      %149 = sbr.rel (%p146) target = $region28
    $region27: #{tpu_custom_call.1} parent=5 // pred_region
      %s150 = ssub.s32 %s8, 1
      %s151 = smul.u32 16, %s18
      %p152 = scmp.lt.s32.totalorder %s17, 0
      %s153 = scalar_select %p152, %s17, 0
      %p154 = scmp.lt.s32.totalorder %s151, 143
      %s155 = scalar_select %p154, %s151, 143
      %s156 = smul.addr %s155, 2
      %s157 = smul.addr %s153, 288
      %s158 = sadd.s32 %s156, %s157
      %s159 = smul.addr %s158, 8
      %s160 = scalar_lea.vmem %s0, %s159
      %p161 = pneg %p48
      %p162 = pneg %p45
      %s163 = smul.u32 16, %s18
      %p164 = scmp.lt.s32.totalorder %s163, 143
      %s165 = scalar_select %p164, %s163, 143
      %s166 = smul.addr %s165, 4
      %s167 = scalar_lea.vmem %s1, %s166
      %p168 = pneg %p74
      %p169 = pneg %p71
      %p170 = pneg %p102
      %p171 = pneg %p99
      %s172 = smul.u32 16, %s18
      %p173 = scmp.lt.s32.totalorder %s17, 0
      %s174 = scalar_select %p173, %s17, 0
      %p175 = scmp.lt.s32.totalorder %s172, 143
      %s176 = scalar_select %p175, %s172, 143
      %s177 = smul.addr %s176, 2
      %s178 = smul.addr %s174, 288
      %s179 = sadd.s32 %s177, %s178
      %s180 = smul.addr %s179, 8
      %s181 = scalar_lea.vmem %s2, %s180
      %s182 = smul.u32 16, %s18
      %p183 = scmp.lt.s32.totalorder %s17, 0
      %s184 = scalar_select %p183, %s17, 0
      %p185 = scmp.lt.s32.totalorder %s182, 143
      %s186 = scalar_select %p185, %s182, 143
      %s187 = smul.addr %s186, 2
      %s188 = smul.addr %s184, 288
      %s189 = sadd.s32 %s187, %s188
      %s190 = smul.addr %s189, 8
      %s191 = scalar_lea.vmem %s0, %s190
      %s192 = smul.u32 16, %s18
      %s193 = smul.u32 16, %s18
      %p194 = scmp.lt.s32.totalorder %s193, 143
      %s195 = scalar_select %p194, %s193, 143
      %s196 = smul.addr %s195, 4
      %s197 = scalar_lea.vmem %s1, %s196
      %s198 = smul.u32 16, %s18
      %s199 = smul.u32 16, %s18
      %p200 = scmp.lt.s32.totalorder %s17, 0
      %s201 = scalar_select %p200, %s17, 0
      %p202 = scmp.lt.s32.totalorder %s199, 143
      %s203 = scalar_select %p202, %s199, 143
      %s204 = smul.addr %s203, 2
      %s205 = smul.addr %s201, 288
      %s206 = sadd.s32 %s204, %s205
      %s207 = smul.addr %s206, 8
      %s208 = scalar_lea.vmem %s2, %s207
      %s209 = smul.u32 16, %s18
      %vm210 = vcmask 146432
      %211 = vst.msk [vmem:[#allocation2] sm:$0xff] %vm210, 0.0
      %212 = vst.msk [vmem:[#allocation2 + $0x8] sm:$0xff] %vm210, 0.0
      %vm213 = vcmask 140288
      %214 = vst.msk [vmem:[#allocation2 + $0x10] sm:$0x3] %vm213, 0.0
      %215 = vst.msk [vmem:[#allocation2 + $0x18] sm:$0xff] %vm210, 0.0
      %216 = vst.msk [vmem:[#allocation2 + $0x20] sm:$0xff] %vm210, 0.0
      %217 = vst.msk [vmem:[#allocation2 + $0x28] sm:$0x3] %vm213, 0.0
      %218 = vst.msk [vmem:[#allocation2 + $0x30] sm:$0xff] %vm210, 0.0
      %219 = vst.msk [vmem:[#allocation2 + $0x38] sm:$0xff] %vm210, 0.0
      %220 = vst.msk [vmem:[#allocation2 + $0x40] sm:$0x3] %vm213, 0.0
      %221 = vst.msk [vmem:[#allocation2 + $0x48] sm:$0xff] %vm210, 0.0
      %222 = vst.msk [vmem:[#allocation2 + $0x50] sm:$0xff] %vm210, 0.0
      %223 = vst.msk [vmem:[#allocation2 + $0x58] sm:$0x3] %vm213, 0.0
      %224 = vst.msk [vmem:[#allocation2 + $0x60] sm:$0xff] %vm210, 0.0
      %225 = vst.msk [vmem:[#allocation2 + $0x68] sm:$0xff] %vm210, 0.0
      %226 = vst.msk [vmem:[#allocation2 + $0x70] sm:$0x3] %vm213, 0.0
      %227 = vst.msk [vmem:[#allocation2 + $0x78] sm:$0xff] %vm210, 0.0
      %228 = vst.msk [vmem:[#allocation2 + $0x80] sm:$0xff] %vm210, 0.0
      %229 = vst.msk [vmem:[#allocation2 + $0x88] sm:$0x3] %vm213, 0.0
      %230 = vst.msk [vmem:[#allocation2 + $0x90] sm:$0xff] %vm210, 0.0
      %231 = vst.msk [vmem:[#allocation2 + $0x98] sm:$0xff] %vm210, 0.0
      %232 = vst.msk [vmem:[#allocation2 + $0xa0] sm:$0x3] %vm213, 0.0
      %233 = vst.msk [vmem:[#allocation2 + $0xa8] sm:$0xff] %vm210, 0.0
      %234 = vst.msk [vmem:[#allocation2 + $0xb0] sm:$0xff] %vm210, 0.0
      %235 = vst.msk [vmem:[#allocation2 + $0xb8] sm:$0x3] %vm213, 0.0
      %236 = vst.msk [vmem:[#allocation2 + $0xc0] sm:$0xff] %vm210, 0.0
      %237 = vst.msk [vmem:[#allocation2 + $0xc8] sm:$0xff] %vm210, 0.0
      %238 = vst.msk [vmem:[#allocation2 + $0xd0] sm:$0x3] %vm213, 0.0
      %239 = vst.msk [vmem:[#allocation2 + $0xd8] sm:$0xff] %vm210, 0.0
      %240 = vst.msk [vmem:[#allocation2 + $0xe0] sm:$0xff] %vm210, 0.0
      %241 = vst.msk [vmem:[#allocation2 + $0xe8] sm:$0x3] %vm213, 0.0
      %242 = vst.msk [vmem:[#allocation2 + $0xf0] sm:$0xff] %vm210, 0.0
      %243 = vst.msk [vmem:[#allocation2 + $0xf8] sm:$0xff] %vm210, 0.0
      %244 = vst.msk [vmem:[#allocation2 + $0x100] sm:$0x3] %vm213, 0.0
      %245 = vst.msk [vmem:[#allocation2 + $0x108] sm:$0xff] %vm210, 0.0
      %246 = vst.msk [vmem:[#allocation2 + $0x110] sm:$0xff] %vm210, 0.0
      %247 = vst.msk [vmem:[#allocation2 + $0x118] sm:$0x3] %vm213, 0.0
      %248 = vst.msk [vmem:[#allocation2 + $0x120] sm:$0xff] %vm210, 0.0
      %249 = vst.msk [vmem:[#allocation2 + $0x128] sm:$0xff] %vm210, 0.0
      %250 = vst.msk [vmem:[#allocation2 + $0x130] sm:$0x3] %vm213, 0.0
      %251 = vst.msk [vmem:[#allocation2 + $0x138] sm:$0xff] %vm210, 0.0
      %252 = vst.msk [vmem:[#allocation2 + $0x140] sm:$0xff] %vm210, 0.0
      %253 = vst.msk [vmem:[#allocation2 + $0x148] sm:$0x3] %vm213, 0.0
      %254 = vst.msk [vmem:[#allocation2 + $0x150] sm:$0xff] %vm210, 0.0
      %255 = vst.msk [vmem:[#allocation2 + $0x158] sm:$0xff] %vm210, 0.0
      %256 = vst.msk [vmem:[#allocation2 + $0x160] sm:$0x3] %vm213, 0.0
      %257 = vst.msk [vmem:[#allocation2 + $0x168] sm:$0xff] %vm210, 0.0
      %258 = vst.msk [vmem:[#allocation2 + $0x170] sm:$0xff] %vm210, 0.0
      %259 = vst.msk [vmem:[#allocation2 + $0x178] sm:$0x3] %vm213, 0.0
      %v260 = vld [vmem:[%s191] sm:$0xff]
      %v261 = vld [vmem:[%s191 + $0x8] sm:$0xff]
      %v262 = vld [vmem:[%s191 + $0x10] sm:$0xff]
      %v263 = vld [vmem:[%s191 + $0x18] sm:$0xff]
      %v264 = vld [vmem:[%s191 + $0x20] sm:$0xff]
      %v265 = vld [vmem:[%s191 + $0x28] sm:$0xff]
      %v266 = vld [vmem:[%s191 + $0x30] sm:$0xff]
      %v267 = vld [vmem:[%s191 + $0x38] sm:$0xff]
      %v268 = vld [vmem:[%s191 + $0x40] sm:$0xff]
      %v269 = vld [vmem:[%s191 + $0x48] sm:$0xff]
      %v270 = vld [vmem:[%s191 + $0x50] sm:$0xff]
      %v271 = vld [vmem:[%s191 + $0x58] sm:$0xff]
      %v272 = vld [vmem:[%s191 + $0x60] sm:$0xff]
      %v273 = vld [vmem:[%s191 + $0x68] sm:$0xff]
      %v274 = vld [vmem:[%s191 + $0x70] sm:$0xff]
      %v275 = vld [vmem:[%s191 + $0x78] sm:$0xff]
      %v276 = vld [vmem:[%s191 + $0x80] sm:$0xff]
      %v277 = vld [vmem:[%s191 + $0x88] sm:$0xff]
      %v278 = vld [vmem:[%s191 + $0x90] sm:$0xff]
      %v279 = vld [vmem:[%s191 + $0x98] sm:$0xff]
      %v280 = vld [vmem:[%s191 + $0xa0] sm:$0xff]
      %v281 = vld [vmem:[%s191 + $0xa8] sm:$0xff]
      %v282 = vld [vmem:[%s191 + $0xb0] sm:$0xff]
      %v283 = vld [vmem:[%s191 + $0xb8] sm:$0xff]
      %v284 = vld [vmem:[%s191 + $0xc0] sm:$0xff]
      %v285 = vld [vmem:[%s191 + $0xc8] sm:$0xff]
      %v286 = vld [vmem:[%s191 + $0xd0] sm:$0xff]
      %v287 = vld [vmem:[%s191 + $0xd8] sm:$0xff]
      %v288 = vld [vmem:[%s191 + $0xe0] sm:$0xff]
      %v289 = vld [vmem:[%s191 + $0xe8] sm:$0xff]
      %v290 = vld [vmem:[%s191 + $0xf0] sm:$0xff]
      %v291 = vld [vmem:[%s191 + $0xf8] sm:$0xff]
      %324 = vrot.lane.b32.xlu0 %v260, 1
      %v325 = vpop.permute.xlu0 %324
      %326 = vrot.lane.b32.xlu0 %v261, 1
      %v327 = vpop.permute.xlu0 %326
      %328 = vrot.lane.b32.xlu0 %v262, 1
      %v329 = vpop.permute.xlu0 %328
      %330 = vrot.lane.b32.xlu0 %v263, 1
      %v331 = vpop.permute.xlu0 %330
      %332 = vrot.lane.b32.xlu0 %v264, 1
      %v333 = vpop.permute.xlu0 %332
      %334 = vrot.lane.b32.xlu0 %v265, 1
      %v335 = vpop.permute.xlu0 %334
      %336 = vrot.lane.b32.xlu0 %v266, 1
      %v337 = vpop.permute.xlu0 %336
      %338 = vrot.lane.b32.xlu0 %v267, 1
      %v339 = vpop.permute.xlu0 %338
      %340 = vrot.lane.b32.xlu0 %v268, 1
      %v341 = vpop.permute.xlu0 %340
      %342 = vrot.lane.b32.xlu0 %v269, 1
      %v343 = vpop.permute.xlu0 %342
      %344 = vrot.lane.b32.xlu0 %v270, 1
      %v345 = vpop.permute.xlu0 %344
      %346 = vrot.lane.b32.xlu0 %v271, 1
      %v347 = vpop.permute.xlu0 %346
      %348 = vrot.lane.b32.xlu0 %v272, 1
      %v349 = vpop.permute.xlu0 %348
      %350 = vrot.lane.b32.xlu0 %v273, 1
      %v351 = vpop.permute.xlu0 %350
      %352 = vrot.lane.b32.xlu0 %v274, 1
      %v353 = vpop.permute.xlu0 %352
      %354 = vrot.lane.b32.xlu0 %v275, 1
      %v355 = vpop.permute.xlu0 %354
      %356 = vrot.lane.b32.xlu0 %v276, 1
      %v357 = vpop.permute.xlu0 %356
      %358 = vrot.lane.b32.xlu0 %v277, 1
      %v359 = vpop.permute.xlu0 %358
      %360 = vrot.lane.b32.xlu0 %v278, 1
      %v361 = vpop.permute.xlu0 %360
      %362 = vrot.lane.b32.xlu0 %v279, 1
      %v363 = vpop.permute.xlu0 %362
      %364 = vrot.lane.b32.xlu0 %v280, 1
      %v365 = vpop.permute.xlu0 %364
      %366 = vrot.lane.b32.xlu0 %v281, 1
      %v367 = vpop.permute.xlu0 %366
      %368 = vrot.lane.b32.xlu0 %v282, 1
      %v369 = vpop.permute.xlu0 %368
      %370 = vrot.lane.b32.xlu0 %v283, 1
      %v371 = vpop.permute.xlu0 %370
      %372 = vrot.lane.b32.xlu0 %v284, 1
      %v373 = vpop.permute.xlu0 %372
      %374 = vrot.lane.b32.xlu0 %v285, 1
      %v375 = vpop.permute.xlu0 %374
      %376 = vrot.lane.b32.xlu0 %v286, 1
      %v377 = vpop.permute.xlu0 %376
      %378 = vrot.lane.b32.xlu0 %v287, 1
      %v379 = vpop.permute.xlu0 %378
      %380 = vrot.lane.b32.xlu0 %v288, 1
      %v381 = vpop.permute.xlu0 %380
      %382 = vrot.lane.b32.xlu0 %v289, 1
      %v383 = vpop.permute.xlu0 %382
      %384 = vrot.lane.b32.xlu0 %v290, 1
      %v385 = vpop.permute.xlu0 %384
      %386 = vrot.lane.b32.xlu0 %v291, 1
      %v387 = vpop.permute.xlu0 %386
      %vm420 = vcmask 138248
      %421 = vst.msk [vmem:[#allocation2 + $0x1] sm:$0xff] %vm420, %v325
      %422 = vst.msk [vmem:[#allocation2 + $0x9] sm:$0xff] %vm420, %v327
      %423 = vst.msk [vmem:[#allocation2 + $0x19] sm:$0xff] %vm420, %v329
      %424 = vst.msk [vmem:[#allocation2 + $0x21] sm:$0xff] %vm420, %v331
      %425 = vst.msk [vmem:[#allocation2 + $0x31] sm:$0xff] %vm420, %v333
      %426 = vst.msk [vmem:[#allocation2 + $0x39] sm:$0xff] %vm420, %v335
      %427 = vst.msk [vmem:[#allocation2 + $0x49] sm:$0xff] %vm420, %v337
      %428 = vst.msk [vmem:[#allocation2 + $0x51] sm:$0xff] %vm420, %v339
      %429 = vst.msk [vmem:[#allocation2 + $0x61] sm:$0xff] %vm420, %v341
      %430 = vst.msk [vmem:[#allocation2 + $0x69] sm:$0xff] %vm420, %v343
      %431 = vst.msk [vmem:[#allocation2 + $0x79] sm:$0xff] %vm420, %v345
      %432 = vst.msk [vmem:[#allocation2 + $0x81] sm:$0xff] %vm420, %v347
      %433 = vst.msk [vmem:[#allocation2 + $0x91] sm:$0xff] %vm420, %v349
      %434 = vst.msk [vmem:[#allocation2 + $0x99] sm:$0xff] %vm420, %v351
      %435 = vst.msk [vmem:[#allocation2 + $0xa9] sm:$0xff] %vm420, %v353
      %436 = vst.msk [vmem:[#allocation2 + $0xb1] sm:$0xff] %vm420, %v355
      %437 = vst.msk [vmem:[#allocation2 + $0xc1] sm:$0xff] %vm420, %v357
      %438 = vst.msk [vmem:[#allocation2 + $0xc9] sm:$0xff] %vm420, %v359
      %439 = vst.msk [vmem:[#allocation2 + $0xd9] sm:$0xff] %vm420, %v361
      %440 = vst.msk [vmem:[#allocation2 + $0xe1] sm:$0xff] %vm420, %v363
      %441 = vst.msk [vmem:[#allocation2 + $0xf1] sm:$0xff] %vm420, %v365
      %442 = vst.msk [vmem:[#allocation2 + $0xf9] sm:$0xff] %vm420, %v367
      %443 = vst.msk [vmem:[#allocation2 + $0x109] sm:$0xff] %vm420, %v369
      %444 = vst.msk [vmem:[#allocation2 + $0x111] sm:$0xff] %vm420, %v371
      %445 = vst.msk [vmem:[#allocation2 + $0x121] sm:$0xff] %vm420, %v373
      %446 = vst.msk [vmem:[#allocation2 + $0x129] sm:$0xff] %vm420, %v375
      %447 = vst.msk [vmem:[#allocation2 + $0x139] sm:$0xff] %vm420, %v377
      %448 = vst.msk [vmem:[#allocation2 + $0x141] sm:$0xff] %vm420, %v379
      %449 = vst.msk [vmem:[#allocation2 + $0x151] sm:$0xff] %vm420, %v381
      %450 = vst.msk [vmem:[#allocation2 + $0x159] sm:$0xff] %vm420, %v383
      %451 = vst.msk [vmem:[#allocation2 + $0x169] sm:$0xff] %vm420, %v385
      %452 = vst.msk [vmem:[#allocation2 + $0x171] sm:$0xff] %vm420, %v387
      %v453 = vld [vmem:[#allocation2] sm:$0xff]
      %v454 = vld [vmem:[#allocation2 + $0x18] sm:$0xff]
      %v455 = vld [vmem:[#allocation2 + $0x30] sm:$0xff]
      %v456 = vld [vmem:[#allocation2 + $0x48] sm:$0xff]
      %v457 = vld [vmem:[#allocation2 + $0x60] sm:$0xff]
      %v458 = vld [vmem:[#allocation2 + $0x78] sm:$0xff]
      %v459 = vld [vmem:[#allocation2 + $0x90] sm:$0xff]
      %v460 = vld [vmem:[#allocation2 + $0xa8] sm:$0xff]
      %v461 = vld [vmem:[#allocation2 + $0xc0] sm:$0xff]
      %v462 = vld [vmem:[#allocation2 + $0xd8] sm:$0xff]
      %v463 = vld [vmem:[#allocation2 + $0xf0] sm:$0xff]
      %v464 = vld [vmem:[#allocation2 + $0x108] sm:$0xff]
      %v465 = vld [vmem:[#allocation2 + $0x120] sm:$0xff]
      %v466 = vld [vmem:[#allocation2 + $0x138] sm:$0xff]
      %v467 = vld [vmem:[#allocation2 + $0x150] sm:$0xff]
      %v468 = vld [vmem:[#allocation2 + $0x168] sm:$0xff]
      %v469 = vld [vmem:[%s197] sm:$0x1]
      %v470 = vld [vmem:[%s197 + $0x4] sm:$0x1]
      %v471 = vld [vmem:[%s197 + $0x8] sm:$0x1]
      %v472 = vld [vmem:[%s197 + $0xc] sm:$0x1]
      %v473 = vld [vmem:[%s197 + $0x10] sm:$0x1]
      %v474 = vld [vmem:[%s197 + $0x14] sm:$0x1]
      %v475 = vld [vmem:[%s197 + $0x18] sm:$0x1]
      %v476 = vld [vmem:[%s197 + $0x1c] sm:$0x1]
      %v477 = vld [vmem:[%s197 + $0x20] sm:$0x1]
      %v478 = vld [vmem:[%s197 + $0x24] sm:$0x1]
      %v479 = vld [vmem:[%s197 + $0x28] sm:$0x1]
      %v480 = vld [vmem:[%s197 + $0x2c] sm:$0x1]
      %v481 = vld [vmem:[%s197 + $0x30] sm:$0x1]
      %v482 = vld [vmem:[%s197 + $0x34] sm:$0x1]
      %v483 = vld [vmem:[%s197 + $0x38] sm:$0x1]
      %v484 = vld [vmem:[%s197 + $0x3c] sm:$0x1]
      %s486 = vtos %v469
      %v487 = vstv %s486
      %s490 = vtos %v470
      %v491 = vstv %s490
      %s494 = vtos %v471
      %v495 = vstv %s494
      %s498 = vtos %v472
      %v499 = vstv %s498
      %s502 = vtos %v473
      %v503 = vstv %s502
      %s506 = vtos %v474
      %v507 = vstv %s506
      %s510 = vtos %v475
      %v511 = vstv %s510
      %s514 = vtos %v476
      %v515 = vstv %s514
      %s518 = vtos %v477
      %v519 = vstv %s518
      %s522 = vtos %v478
      %v523 = vstv %s522
      %s526 = vtos %v479
      %v527 = vstv %s526
      %s530 = vtos %v480
      %v531 = vstv %s530
      %s534 = vtos %v481
      %v535 = vstv %s534
      %s538 = vtos %v482
      %v539 = vstv %s538
      %s542 = vtos %v483
      %v543 = vstv %s542
      %s546 = vtos %v484
      %v547 = vstv %s546
      %v549 = vmul.f32 %v453, %v487
      %v550 = vmul.f32 %v454, %v491
      %v551 = vmul.f32 %v455, %v495
      %v552 = vmul.f32 %v456, %v499
      %v553 = vmul.f32 %v457, %v503
      %v554 = vmul.f32 %v458, %v507
      %v555 = vmul.f32 %v459, %v511
      %v556 = vmul.f32 %v460, %v515
      %v557 = vmul.f32 %v461, %v519
      %v558 = vmul.f32 %v462, %v523
      %v559 = vmul.f32 %v463, %v527
      %v560 = vmul.f32 %v464, %v531
      %v561 = vmul.f32 %v465, %v535
      %v562 = vmul.f32 %v466, %v539
      %v563 = vmul.f32 %v467, %v543
      %v564 = vmul.f32 %v468, %v547
      %v565 = vadd.f32 %v549, 0.0
      %v566 = vadd.f32 %v550, 0.0
      %v567 = vadd.f32 %v551, 0.0
      %v568 = vadd.f32 %v552, 0.0
      %v569 = vadd.f32 %v553, 0.0
      %v570 = vadd.f32 %v554, 0.0
      %v571 = vadd.f32 %v555, 0.0
      %v572 = vadd.f32 %v556, 0.0
      %v573 = vadd.f32 %v557, 0.0
      %v574 = vadd.f32 %v558, 0.0
      %v575 = vadd.f32 %v559, 0.0
      %v576 = vadd.f32 %v560, 0.0
      %v577 = vadd.f32 %v561, 0.0
      %v578 = vadd.f32 %v562, 0.0
      %v579 = vadd.f32 %v563, 0.0
      %v580 = vadd.f32 %v564, 0.0
      %581 = vrot.lane.b32.xlu0 %v469, 127
      %v582 = vpop.permute.xlu0 %581
      %583 = vrot.lane.b32.xlu0 %v470, 127
      %v584 = vpop.permute.xlu0 %583
      %585 = vrot.lane.b32.xlu0 %v471, 127
      %v586 = vpop.permute.xlu0 %585
      %587 = vrot.lane.b32.xlu0 %v472, 127
      %v588 = vpop.permute.xlu0 %587
      %589 = vrot.lane.b32.xlu0 %v473, 127
      %v590 = vpop.permute.xlu0 %589
      %591 = vrot.lane.b32.xlu0 %v474, 127
      %v592 = vpop.permute.xlu0 %591
      %593 = vrot.lane.b32.xlu0 %v475, 127
      %v594 = vpop.permute.xlu0 %593
      %595 = vrot.lane.b32.xlu0 %v476, 127
      %v596 = vpop.permute.xlu0 %595
      %597 = vrot.lane.b32.xlu0 %v477, 127
      %v598 = vpop.permute.xlu0 %597
      %599 = vrot.lane.b32.xlu0 %v478, 127
      %v600 = vpop.permute.xlu0 %599
      %601 = vrot.lane.b32.xlu0 %v479, 127
      %v602 = vpop.permute.xlu0 %601
      %603 = vrot.lane.b32.xlu0 %v480, 127
      %v604 = vpop.permute.xlu0 %603
      %605 = vrot.lane.b32.xlu0 %v481, 127
      %v606 = vpop.permute.xlu0 %605
      %607 = vrot.lane.b32.xlu0 %v482, 127
      %v608 = vpop.permute.xlu0 %607
      %609 = vrot.lane.b32.xlu0 %v483, 127
      %v610 = vpop.permute.xlu0 %609
      %611 = vrot.lane.b32.xlu0 %v484, 127
      %v612 = vpop.permute.xlu0 %611
      %s613 = vtos %v582
      %v614 = vstv %s613
      %s616 = vtos %v584
      %v617 = vstv %s616
      %s619 = vtos %v586
      %v620 = vstv %s619
      %s622 = vtos %v588
      %v623 = vstv %s622
      %s625 = vtos %v590
      %v626 = vstv %s625
      %s628 = vtos %v592
      %v629 = vstv %s628
      %s631 = vtos %v594
      %v632 = vstv %s631
      %s634 = vtos %v596
      %v635 = vstv %s634
      %s637 = vtos %v598
      %v638 = vstv %s637
      %s640 = vtos %v600
      %v641 = vstv %s640
      %s643 = vtos %v602
      %v644 = vstv %s643
      %s646 = vtos %v604
      %v647 = vstv %s646
      %s649 = vtos %v606
      %v650 = vstv %s649
      %s652 = vtos %v608
      %v653 = vstv %s652
      %s655 = vtos %v610
      %v656 = vstv %s655
      %s658 = vtos %v612
      %v659 = vstv %s658
      %v661 = vmul.f32 %v453, %v614
      %v662 = vmul.f32 %v454, %v617
      %v663 = vmul.f32 %v455, %v620
      %v664 = vmul.f32 %v456, %v623
      %v665 = vmul.f32 %v457, %v626
      %v666 = vmul.f32 %v458, %v629
      %v667 = vmul.f32 %v459, %v632
      %v668 = vmul.f32 %v460, %v635
      %v669 = vmul.f32 %v461, %v638
      %v670 = vmul.f32 %v462, %v641
      %v671 = vmul.f32 %v463, %v644
      %v672 = vmul.f32 %v464, %v647
      %v673 = vmul.f32 %v465, %v650
      %v674 = vmul.f32 %v466, %v653
      %v675 = vmul.f32 %v467, %v656
      %v676 = vmul.f32 %v468, %v659
      %693 = vrot.lane.b32.xlu0 %v661, 127
      %v694 = vpop.permute.xlu0 %693
      %695 = vrot.lane.b32.xlu0 %v662, 127
      %v696 = vpop.permute.xlu0 %695
      %697 = vrot.lane.b32.xlu0 %v663, 127
      %v698 = vpop.permute.xlu0 %697
      %699 = vrot.lane.b32.xlu0 %v664, 127
      %v700 = vpop.permute.xlu0 %699
      %701 = vrot.lane.b32.xlu0 %v665, 127
      %v702 = vpop.permute.xlu0 %701
      %703 = vrot.lane.b32.xlu0 %v666, 127
      %v704 = vpop.permute.xlu0 %703
      %705 = vrot.lane.b32.xlu0 %v667, 127
      %v706 = vpop.permute.xlu0 %705
      %707 = vrot.lane.b32.xlu0 %v668, 127
      %v708 = vpop.permute.xlu0 %707
      %709 = vrot.lane.b32.xlu0 %v669, 127
      %v710 = vpop.permute.xlu0 %709
      %711 = vrot.lane.b32.xlu0 %v670, 127
      %v712 = vpop.permute.xlu0 %711
      %713 = vrot.lane.b32.xlu0 %v671, 127
      %v714 = vpop.permute.xlu0 %713
      %715 = vrot.lane.b32.xlu0 %v672, 127
      %v716 = vpop.permute.xlu0 %715
      %717 = vrot.lane.b32.xlu0 %v673, 127
      %v718 = vpop.permute.xlu0 %717
      %719 = vrot.lane.b32.xlu0 %v674, 127
      %v720 = vpop.permute.xlu0 %719
      %721 = vrot.lane.b32.xlu0 %v675, 127
      %v722 = vpop.permute.xlu0 %721
      %723 = vrot.lane.b32.xlu0 %v676, 127
      %v724 = vpop.permute.xlu0 %723
      %v741 = vadd.f32 %v565, %v694
      %v742 = vadd.f32 %v566, %v696
      %v743 = vadd.f32 %v567, %v698
      %v744 = vadd.f32 %v568, %v700
      %v745 = vadd.f32 %v569, %v702
      %v746 = vadd.f32 %v570, %v704
      %v747 = vadd.f32 %v571, %v706
      %v748 = vadd.f32 %v572, %v708
      %v749 = vadd.f32 %v573, %v710
      %v750 = vadd.f32 %v574, %v712
      %v751 = vadd.f32 %v575, %v714
      %v752 = vadd.f32 %v576, %v716
      %v753 = vadd.f32 %v577, %v718
      %v754 = vadd.f32 %v578, %v720
      %v755 = vadd.f32 %v579, %v722
      %v756 = vadd.f32 %v580, %v724
      %757 = vrot.lane.b32.xlu0 %v469, 126
      %v758 = vpop.permute.xlu0 %757
      %759 = vrot.lane.b32.xlu0 %v470, 126
      %v760 = vpop.permute.xlu0 %759
      %761 = vrot.lane.b32.xlu0 %v471, 126
      %v762 = vpop.permute.xlu0 %761
      %763 = vrot.lane.b32.xlu0 %v472, 126
      %v764 = vpop.permute.xlu0 %763
      %765 = vrot.lane.b32.xlu0 %v473, 126
      %v766 = vpop.permute.xlu0 %765
      %767 = vrot.lane.b32.xlu0 %v474, 126
      %v768 = vpop.permute.xlu0 %767
      %769 = vrot.lane.b32.xlu0 %v475, 126
      %v770 = vpop.permute.xlu0 %769
      %771 = vrot.lane.b32.xlu0 %v476, 126
      %v772 = vpop.permute.xlu0 %771
      %773 = vrot.lane.b32.xlu0 %v477, 126
      %v774 = vpop.permute.xlu0 %773
      %775 = vrot.lane.b32.xlu0 %v478, 126
      %v776 = vpop.permute.xlu0 %775
      %777 = vrot.lane.b32.xlu0 %v479, 126
      %v778 = vpop.permute.xlu0 %777
      %779 = vrot.lane.b32.xlu0 %v480, 126
      %v780 = vpop.permute.xlu0 %779
      %781 = vrot.lane.b32.xlu0 %v481, 126
      %v782 = vpop.permute.xlu0 %781
      %783 = vrot.lane.b32.xlu0 %v482, 126
      %v784 = vpop.permute.xlu0 %783
      %785 = vrot.lane.b32.xlu0 %v483, 126
      %v786 = vpop.permute.xlu0 %785
      %787 = vrot.lane.b32.xlu0 %v484, 126
      %v788 = vpop.permute.xlu0 %787
      %s789 = vtos %v758
      %v790 = vstv %s789
      %s792 = vtos %v760
      %v793 = vstv %s792
      %s795 = vtos %v762
      %v796 = vstv %s795
      %s798 = vtos %v764
      %v799 = vstv %s798
      %s801 = vtos %v766
      %v802 = vstv %s801
      %s804 = vtos %v768
      %v805 = vstv %s804
      %s807 = vtos %v770
      %v808 = vstv %s807
      %s810 = vtos %v772
      %v811 = vstv %s810
      %s813 = vtos %v774
      %v814 = vstv %s813
      %s816 = vtos %v776
      %v817 = vstv %s816
      %s819 = vtos %v778
      %v820 = vstv %s819
      %s822 = vtos %v780
      %v823 = vstv %s822
      %s825 = vtos %v782
      %v826 = vstv %s825
      %s828 = vtos %v784
      %v829 = vstv %s828
      %s831 = vtos %v786
      %v832 = vstv %s831
      %s834 = vtos %v788
      %v835 = vstv %s834
      %v837 = vmul.f32 %v453, %v790
      %v838 = vmul.f32 %v454, %v793
      %v839 = vmul.f32 %v455, %v796
      %v840 = vmul.f32 %v456, %v799
      %v841 = vmul.f32 %v457, %v802
      %v842 = vmul.f32 %v458, %v805
      %v843 = vmul.f32 %v459, %v808
      %v844 = vmul.f32 %v460, %v811
      %v845 = vmul.f32 %v461, %v814
      %v846 = vmul.f32 %v462, %v817
      %v847 = vmul.f32 %v463, %v820
      %v848 = vmul.f32 %v464, %v823
      %v849 = vmul.f32 %v465, %v826
      %v850 = vmul.f32 %v466, %v829
      %v851 = vmul.f32 %v467, %v832
      %v852 = vmul.f32 %v468, %v835
      %869 = vrot.lane.b32.xlu0 %v837, 126
      %v870 = vpop.permute.xlu0 %869
      %871 = vrot.lane.b32.xlu0 %v838, 126
      %v872 = vpop.permute.xlu0 %871
      %873 = vrot.lane.b32.xlu0 %v839, 126
      %v874 = vpop.permute.xlu0 %873
      %875 = vrot.lane.b32.xlu0 %v840, 126
      %v876 = vpop.permute.xlu0 %875
      %877 = vrot.lane.b32.xlu0 %v841, 126
      %v878 = vpop.permute.xlu0 %877
      %879 = vrot.lane.b32.xlu0 %v842, 126
      %v880 = vpop.permute.xlu0 %879
      %881 = vrot.lane.b32.xlu0 %v843, 126
      %v882 = vpop.permute.xlu0 %881
      %883 = vrot.lane.b32.xlu0 %v844, 126
      %v884 = vpop.permute.xlu0 %883
      %885 = vrot.lane.b32.xlu0 %v845, 126
      %v886 = vpop.permute.xlu0 %885
      %887 = vrot.lane.b32.xlu0 %v846, 126
      %v888 = vpop.permute.xlu0 %887
      %889 = vrot.lane.b32.xlu0 %v847, 126
      %v890 = vpop.permute.xlu0 %889
      %891 = vrot.lane.b32.xlu0 %v848, 126
      %v892 = vpop.permute.xlu0 %891
      %893 = vrot.lane.b32.xlu0 %v849, 126
      %v894 = vpop.permute.xlu0 %893
      %895 = vrot.lane.b32.xlu0 %v850, 126
      %v896 = vpop.permute.xlu0 %895
      %897 = vrot.lane.b32.xlu0 %v851, 126
      %v898 = vpop.permute.xlu0 %897
      %899 = vrot.lane.b32.xlu0 %v852, 126
      %v900 = vpop.permute.xlu0 %899
      %v917 = vadd.f32 %v741, %v870
      %v918 = vadd.f32 %v742, %v872
      %v919 = vadd.f32 %v743, %v874
      %v920 = vadd.f32 %v744, %v876
      %v921 = vadd.f32 %v745, %v878
      %v922 = vadd.f32 %v746, %v880
      %v923 = vadd.f32 %v747, %v882
      %v924 = vadd.f32 %v748, %v884
      %v925 = vadd.f32 %v749, %v886
      %v926 = vadd.f32 %v750, %v888
      %v927 = vadd.f32 %v751, %v890
      %v928 = vadd.f32 %v752, %v892
      %v929 = vadd.f32 %v753, %v894
      %v930 = vadd.f32 %v754, %v896
      %v931 = vadd.f32 %v755, %v898
      %v932 = vadd.f32 %v756, %v900
      %v933 = vld [vmem:[#allocation2 + $0x1] sm:$0xff]
      %v934 = vld [vmem:[#allocation2 + $0x19] sm:$0xff]
      %v935 = vld [vmem:[#allocation2 + $0x31] sm:$0xff]
      %v936 = vld [vmem:[#allocation2 + $0x49] sm:$0xff]
      %v937 = vld [vmem:[#allocation2 + $0x61] sm:$0xff]
      %v938 = vld [vmem:[#allocation2 + $0x79] sm:$0xff]
      %v939 = vld [vmem:[#allocation2 + $0x91] sm:$0xff]
      %v940 = vld [vmem:[#allocation2 + $0xa9] sm:$0xff]
      %v941 = vld [vmem:[#allocation2 + $0xc1] sm:$0xff]
      %v942 = vld [vmem:[#allocation2 + $0xd9] sm:$0xff]
      %v943 = vld [vmem:[#allocation2 + $0xf1] sm:$0xff]
      %v944 = vld [vmem:[#allocation2 + $0x109] sm:$0xff]
      %v945 = vld [vmem:[#allocation2 + $0x121] sm:$0xff]
      %v946 = vld [vmem:[#allocation2 + $0x139] sm:$0xff]
      %v947 = vld [vmem:[#allocation2 + $0x151] sm:$0xff]
      %v948 = vld [vmem:[#allocation2 + $0x169] sm:$0xff]
      %v949 = vld [vmem:[%s197 + $0x1] sm:$0x1]
      %v950 = vld [vmem:[%s197 + $0x5] sm:$0x1]
      %v951 = vld [vmem:[%s197 + $0x9] sm:$0x1]
      %v952 = vld [vmem:[%s197 + $0xd] sm:$0x1]
      %v953 = vld [vmem:[%s197 + $0x11] sm:$0x1]
      %v954 = vld [vmem:[%s197 + $0x15] sm:$0x1]
      %v955 = vld [vmem:[%s197 + $0x19] sm:$0x1]
      %v956 = vld [vmem:[%s197 + $0x1d] sm:$0x1]
      %v957 = vld [vmem:[%s197 + $0x21] sm:$0x1]
      %v958 = vld [vmem:[%s197 + $0x25] sm:$0x1]
      %v959 = vld [vmem:[%s197 + $0x29] sm:$0x1]
      %v960 = vld [vmem:[%s197 + $0x2d] sm:$0x1]
      %v961 = vld [vmem:[%s197 + $0x31] sm:$0x1]
      %v962 = vld [vmem:[%s197 + $0x35] sm:$0x1]
      %v963 = vld [vmem:[%s197 + $0x39] sm:$0x1]
      %v964 = vld [vmem:[%s197 + $0x3d] sm:$0x1]
      %s966 = vtos %v949
      %v967 = vstv %s966
      %s970 = vtos %v950
      %v971 = vstv %s970
      %s974 = vtos %v951
      %v975 = vstv %s974
      %s978 = vtos %v952
      %v979 = vstv %s978
      %s982 = vtos %v953
      %v983 = vstv %s982
      %s986 = vtos %v954
      %v987 = vstv %s986
      %s990 = vtos %v955
      %v991 = vstv %s990
      %s994 = vtos %v956
      %v995 = vstv %s994
      %s998 = vtos %v957
      %v999 = vstv %s998
      %s1002 = vtos %v958
      %v1003 = vstv %s1002
      %s1006 = vtos %v959
      %v1007 = vstv %s1006
      %s1010 = vtos %v960
      %v1011 = vstv %s1010
      %s1014 = vtos %v961
      %v1015 = vstv %s1014
      %s1018 = vtos %v962
      %v1019 = vstv %s1018
      %s1022 = vtos %v963
      %v1023 = vstv %s1022
      %s1026 = vtos %v964
      %v1027 = vstv %s1026
      %v1029 = vmul.f32 %v933, %v967
      %v1030 = vmul.f32 %v934, %v971
      %v1031 = vmul.f32 %v935, %v975
      %v1032 = vmul.f32 %v936, %v979
      %v1033 = vmul.f32 %v937, %v983
      %v1034 = vmul.f32 %v938, %v987
      %v1035 = vmul.f32 %v939, %v991
      %v1036 = vmul.f32 %v940, %v995
      %v1037 = vmul.f32 %v941, %v999
      %v1038 = vmul.f32 %v942, %v1003
      %v1039 = vmul.f32 %v943, %v1007
      %v1040 = vmul.f32 %v944, %v1011
      %v1041 = vmul.f32 %v945, %v1015
      %v1042 = vmul.f32 %v946, %v1019
      %v1043 = vmul.f32 %v947, %v1023
      %v1044 = vmul.f32 %v948, %v1027
      %v1045 = vadd.f32 %v917, %v1029
      %v1046 = vadd.f32 %v918, %v1030
      %v1047 = vadd.f32 %v919, %v1031
      %v1048 = vadd.f32 %v920, %v1032
      %v1049 = vadd.f32 %v921, %v1033
      %v1050 = vadd.f32 %v922, %v1034
      %v1051 = vadd.f32 %v923, %v1035
      %v1052 = vadd.f32 %v924, %v1036
      %v1053 = vadd.f32 %v925, %v1037
      %v1054 = vadd.f32 %v926, %v1038
      %v1055 = vadd.f32 %v927, %v1039
      %v1056 = vadd.f32 %v928, %v1040
      %v1057 = vadd.f32 %v929, %v1041
      %v1058 = vadd.f32 %v930, %v1042
      %v1059 = vadd.f32 %v931, %v1043
      %v1060 = vadd.f32 %v932, %v1044
      %1061 = vrot.lane.b32.xlu0 %v949, 127
      %v1062 = vpop.permute.xlu0 %1061
      %1063 = vrot.lane.b32.xlu0 %v950, 127
      %v1064 = vpop.permute.xlu0 %1063
      %1065 = vrot.lane.b32.xlu0 %v951, 127
      %v1066 = vpop.permute.xlu0 %1065
      %1067 = vrot.lane.b32.xlu0 %v952, 127
      %v1068 = vpop.permute.xlu0 %1067
      %1069 = vrot.lane.b32.xlu0 %v953, 127
      %v1070 = vpop.permute.xlu0 %1069
      %1071 = vrot.lane.b32.xlu0 %v954, 127
      %v1072 = vpop.permute.xlu0 %1071
      %1073 = vrot.lane.b32.xlu0 %v955, 127
      %v1074 = vpop.permute.xlu0 %1073
      %1075 = vrot.lane.b32.xlu0 %v956, 127
      %v1076 = vpop.permute.xlu0 %1075
      %1077 = vrot.lane.b32.xlu0 %v957, 127
      %v1078 = vpop.permute.xlu0 %1077
      %1079 = vrot.lane.b32.xlu0 %v958, 127
      %v1080 = vpop.permute.xlu0 %1079
      %1081 = vrot.lane.b32.xlu0 %v959, 127
      %v1082 = vpop.permute.xlu0 %1081
      %1083 = vrot.lane.b32.xlu0 %v960, 127
      %v1084 = vpop.permute.xlu0 %1083
      %1085 = vrot.lane.b32.xlu0 %v961, 127
      %v1086 = vpop.permute.xlu0 %1085
      %1087 = vrot.lane.b32.xlu0 %v962, 127
      %v1088 = vpop.permute.xlu0 %1087
      %1089 = vrot.lane.b32.xlu0 %v963, 127
      %v1090 = vpop.permute.xlu0 %1089
      %1091 = vrot.lane.b32.xlu0 %v964, 127
      %v1092 = vpop.permute.xlu0 %1091
      %s1093 = vtos %v1062
      %v1094 = vstv %s1093
      %s1096 = vtos %v1064
      %v1097 = vstv %s1096
      %s1099 = vtos %v1066
      %v1100 = vstv %s1099
      %s1102 = vtos %v1068
      %v1103 = vstv %s1102
      %s1105 = vtos %v1070
      %v1106 = vstv %s1105
      %s1108 = vtos %v1072
      %v1109 = vstv %s1108
      %s1111 = vtos %v1074
      %v1112 = vstv %s1111
      %s1114 = vtos %v1076
      %v1115 = vstv %s1114
      %s1117 = vtos %v1078
      %v1118 = vstv %s1117
      %s1120 = vtos %v1080
      %v1121 = vstv %s1120
      %s1123 = vtos %v1082
      %v1124 = vstv %s1123
      %s1126 = vtos %v1084
      %v1127 = vstv %s1126
      %s1129 = vtos %v1086
      %v1130 = vstv %s1129
      %s1132 = vtos %v1088
      %v1133 = vstv %s1132
      %s1135 = vtos %v1090
      %v1136 = vstv %s1135
      %s1138 = vtos %v1092
      %v1139 = vstv %s1138
      %v1141 = vmul.f32 %v933, %v1094
      %v1142 = vmul.f32 %v934, %v1097
      %v1143 = vmul.f32 %v935, %v1100
      %v1144 = vmul.f32 %v936, %v1103
      %v1145 = vmul.f32 %v937, %v1106
      %v1146 = vmul.f32 %v938, %v1109
      %v1147 = vmul.f32 %v939, %v1112
      %v1148 = vmul.f32 %v940, %v1115
      %v1149 = vmul.f32 %v941, %v1118
      %v1150 = vmul.f32 %v942, %v1121
      %v1151 = vmul.f32 %v943, %v1124
      %v1152 = vmul.f32 %v944, %v1127
      %v1153 = vmul.f32 %v945, %v1130
      %v1154 = vmul.f32 %v946, %v1133
      %v1155 = vmul.f32 %v947, %v1136
      %v1156 = vmul.f32 %v948, %v1139
      %1173 = vrot.lane.b32.xlu0 %v1141, 127
      %v1174 = vpop.permute.xlu0 %1173
      %1175 = vrot.lane.b32.xlu0 %v1142, 127
      %v1176 = vpop.permute.xlu0 %1175
      %1177 = vrot.lane.b32.xlu0 %v1143, 127
      %v1178 = vpop.permute.xlu0 %1177
      %1179 = vrot.lane.b32.xlu0 %v1144, 127
      %v1180 = vpop.permute.xlu0 %1179
      %1181 = vrot.lane.b32.xlu0 %v1145, 127
      %v1182 = vpop.permute.xlu0 %1181
      %1183 = vrot.lane.b32.xlu0 %v1146, 127
      %v1184 = vpop.permute.xlu0 %1183
      %1185 = vrot.lane.b32.xlu0 %v1147, 127
      %v1186 = vpop.permute.xlu0 %1185
      %1187 = vrot.lane.b32.xlu0 %v1148, 127
      %v1188 = vpop.permute.xlu0 %1187
      %1189 = vrot.lane.b32.xlu0 %v1149, 127
      %v1190 = vpop.permute.xlu0 %1189
      %1191 = vrot.lane.b32.xlu0 %v1150, 127
      %v1192 = vpop.permute.xlu0 %1191
      %1193 = vrot.lane.b32.xlu0 %v1151, 127
      %v1194 = vpop.permute.xlu0 %1193
      %1195 = vrot.lane.b32.xlu0 %v1152, 127
      %v1196 = vpop.permute.xlu0 %1195
      %1197 = vrot.lane.b32.xlu0 %v1153, 127
      %v1198 = vpop.permute.xlu0 %1197
      %1199 = vrot.lane.b32.xlu0 %v1154, 127
      %v1200 = vpop.permute.xlu0 %1199
      %1201 = vrot.lane.b32.xlu0 %v1155, 127
      %v1202 = vpop.permute.xlu0 %1201
      %1203 = vrot.lane.b32.xlu0 %v1156, 127
      %v1204 = vpop.permute.xlu0 %1203
      %v1221 = vadd.f32 %v1045, %v1174
      %v1222 = vadd.f32 %v1046, %v1176
      %v1223 = vadd.f32 %v1047, %v1178
      %v1224 = vadd.f32 %v1048, %v1180
      %v1225 = vadd.f32 %v1049, %v1182
      %v1226 = vadd.f32 %v1050, %v1184
      %v1227 = vadd.f32 %v1051, %v1186
      %v1228 = vadd.f32 %v1052, %v1188
      %v1229 = vadd.f32 %v1053, %v1190
      %v1230 = vadd.f32 %v1054, %v1192
      %v1231 = vadd.f32 %v1055, %v1194
      %v1232 = vadd.f32 %v1056, %v1196
      %v1233 = vadd.f32 %v1057, %v1198
      %v1234 = vadd.f32 %v1058, %v1200
      %v1235 = vadd.f32 %v1059, %v1202
      %v1236 = vadd.f32 %v1060, %v1204
      %1237 = vrot.lane.b32.xlu0 %v949, 126
      %v1238 = vpop.permute.xlu0 %1237
      %1239 = vrot.lane.b32.xlu0 %v950, 126
      %v1240 = vpop.permute.xlu0 %1239
      %1241 = vrot.lane.b32.xlu0 %v951, 126
      %v1242 = vpop.permute.xlu0 %1241
      %1243 = vrot.lane.b32.xlu0 %v952, 126
      %v1244 = vpop.permute.xlu0 %1243
      %1245 = vrot.lane.b32.xlu0 %v953, 126
      %v1246 = vpop.permute.xlu0 %1245
      %1247 = vrot.lane.b32.xlu0 %v954, 126
      %v1248 = vpop.permute.xlu0 %1247
      %1249 = vrot.lane.b32.xlu0 %v955, 126
      %v1250 = vpop.permute.xlu0 %1249
      %1251 = vrot.lane.b32.xlu0 %v956, 126
      %v1252 = vpop.permute.xlu0 %1251
      %1253 = vrot.lane.b32.xlu0 %v957, 126
      %v1254 = vpop.permute.xlu0 %1253
      %1255 = vrot.lane.b32.xlu0 %v958, 126
      %v1256 = vpop.permute.xlu0 %1255
      %1257 = vrot.lane.b32.xlu0 %v959, 126
      %v1258 = vpop.permute.xlu0 %1257
      %1259 = vrot.lane.b32.xlu0 %v960, 126
      %v1260 = vpop.permute.xlu0 %1259
      %1261 = vrot.lane.b32.xlu0 %v961, 126
      %v1262 = vpop.permute.xlu0 %1261
      %1263 = vrot.lane.b32.xlu0 %v962, 126
      %v1264 = vpop.permute.xlu0 %1263
      %1265 = vrot.lane.b32.xlu0 %v963, 126
      %v1266 = vpop.permute.xlu0 %1265
      %1267 = vrot.lane.b32.xlu0 %v964, 126
      %v1268 = vpop.permute.xlu0 %1267
      %s1269 = vtos %v1238
      %v1270 = vstv %s1269
      %s1272 = vtos %v1240
      %v1273 = vstv %s1272
      %s1275 = vtos %v1242
      %v1276 = vstv %s1275
      %s1278 = vtos %v1244
      %v1279 = vstv %s1278
      %s1281 = vtos %v1246
      %v1282 = vstv %s1281
      %s1284 = vtos %v1248
      %v1285 = vstv %s1284
      %s1287 = vtos %v1250
      %v1288 = vstv %s1287
      %s1290 = vtos %v1252
      %v1291 = vstv %s1290
      %s1293 = vtos %v1254
      %v1294 = vstv %s1293
      %s1296 = vtos %v1256
      %v1297 = vstv %s1296
      %s1299 = vtos %v1258
      %v1300 = vstv %s1299
      %s1302 = vtos %v1260
      %v1303 = vstv %s1302
      %s1305 = vtos %v1262
      %v1306 = vstv %s1305
      %s1308 = vtos %v1264
      %v1309 = vstv %s1308
      %s1311 = vtos %v1266
      %v1312 = vstv %s1311
      %s1314 = vtos %v1268
      %v1315 = vstv %s1314
      %v1317 = vmul.f32 %v933, %v1270
      %v1318 = vmul.f32 %v934, %v1273
      %v1319 = vmul.f32 %v935, %v1276
      %v1320 = vmul.f32 %v936, %v1279
      %v1321 = vmul.f32 %v937, %v1282
      %v1322 = vmul.f32 %v938, %v1285
      %v1323 = vmul.f32 %v939, %v1288
      %v1324 = vmul.f32 %v940, %v1291
      %v1325 = vmul.f32 %v941, %v1294
      %v1326 = vmul.f32 %v942, %v1297
      %v1327 = vmul.f32 %v943, %v1300
      %v1328 = vmul.f32 %v944, %v1303
      %v1329 = vmul.f32 %v945, %v1306
      %v1330 = vmul.f32 %v946, %v1309
      %v1331 = vmul.f32 %v947, %v1312
      %v1332 = vmul.f32 %v948, %v1315
      %1349 = vrot.lane.b32.xlu0 %v1317, 126
      %v1350 = vpop.permute.xlu0 %1349
      %1351 = vrot.lane.b32.xlu0 %v1318, 126
      %v1352 = vpop.permute.xlu0 %1351
      %1353 = vrot.lane.b32.xlu0 %v1319, 126
      %v1354 = vpop.permute.xlu0 %1353
      %1355 = vrot.lane.b32.xlu0 %v1320, 126
      %v1356 = vpop.permute.xlu0 %1355
      %1357 = vrot.lane.b32.xlu0 %v1321, 126
      %v1358 = vpop.permute.xlu0 %1357
      %1359 = vrot.lane.b32.xlu0 %v1322, 126
      %v1360 = vpop.permute.xlu0 %1359
      %1361 = vrot.lane.b32.xlu0 %v1323, 126
      %v1362 = vpop.permute.xlu0 %1361
      %1363 = vrot.lane.b32.xlu0 %v1324, 126
      %v1364 = vpop.permute.xlu0 %1363
      %1365 = vrot.lane.b32.xlu0 %v1325, 126
      %v1366 = vpop.permute.xlu0 %1365
      %1367 = vrot.lane.b32.xlu0 %v1326, 126
      %v1368 = vpop.permute.xlu0 %1367
      %1369 = vrot.lane.b32.xlu0 %v1327, 126
      %v1370 = vpop.permute.xlu0 %1369
      %1371 = vrot.lane.b32.xlu0 %v1328, 126
      %v1372 = vpop.permute.xlu0 %1371
      %1373 = vrot.lane.b32.xlu0 %v1329, 126
      %v1374 = vpop.permute.xlu0 %1373
      %1375 = vrot.lane.b32.xlu0 %v1330, 126
      %v1376 = vpop.permute.xlu0 %1375
      %1377 = vrot.lane.b32.xlu0 %v1331, 126
      %v1378 = vpop.permute.xlu0 %1377
      %1379 = vrot.lane.b32.xlu0 %v1332, 126
      %v1380 = vpop.permute.xlu0 %1379
      %v1397 = vadd.f32 %v1221, %v1350
      %v1398 = vadd.f32 %v1222, %v1352
      %v1399 = vadd.f32 %v1223, %v1354
      %v1400 = vadd.f32 %v1224, %v1356
      %v1401 = vadd.f32 %v1225, %v1358
      %v1402 = vadd.f32 %v1226, %v1360
      %v1403 = vadd.f32 %v1227, %v1362
      %v1404 = vadd.f32 %v1228, %v1364
      %v1405 = vadd.f32 %v1229, %v1366
      %v1406 = vadd.f32 %v1230, %v1368
      %v1407 = vadd.f32 %v1231, %v1370
      %v1408 = vadd.f32 %v1232, %v1372
      %v1409 = vadd.f32 %v1233, %v1374
      %v1410 = vadd.f32 %v1234, %v1376
      %v1411 = vadd.f32 %v1235, %v1378
      %v1412 = vadd.f32 %v1236, %v1380
      %v1413 = vld [vmem:[#allocation2 + $0x2] sm:$0xff]
      %v1414 = vld [vmem:[#allocation2 + $0x1a] sm:$0xff]
      %v1415 = vld [vmem:[#allocation2 + $0x32] sm:$0xff]
      %v1416 = vld [vmem:[#allocation2 + $0x4a] sm:$0xff]
      %v1417 = vld [vmem:[#allocation2 + $0x62] sm:$0xff]
      %v1418 = vld [vmem:[#allocation2 + $0x7a] sm:$0xff]
      %v1419 = vld [vmem:[#allocation2 + $0x92] sm:$0xff]
      %v1420 = vld [vmem:[#allocation2 + $0xaa] sm:$0xff]
      %v1421 = vld [vmem:[#allocation2 + $0xc2] sm:$0xff]
      %v1422 = vld [vmem:[#allocation2 + $0xda] sm:$0xff]
      %v1423 = vld [vmem:[#allocation2 + $0xf2] sm:$0xff]
      %v1424 = vld [vmem:[#allocation2 + $0x10a] sm:$0xff]
      %v1425 = vld [vmem:[#allocation2 + $0x122] sm:$0xff]
      %v1426 = vld [vmem:[#allocation2 + $0x13a] sm:$0xff]
      %v1427 = vld [vmem:[#allocation2 + $0x152] sm:$0xff]
      %v1428 = vld [vmem:[#allocation2 + $0x16a] sm:$0xff]
      %v1429 = vld [vmem:[%s197 + $0x2] sm:$0x1]
      %v1430 = vld [vmem:[%s197 + $0x6] sm:$0x1]
      %v1431 = vld [vmem:[%s197 + $0xa] sm:$0x1]
      %v1432 = vld [vmem:[%s197 + $0xe] sm:$0x1]
      %v1433 = vld [vmem:[%s197 + $0x12] sm:$0x1]
      %v1434 = vld [vmem:[%s197 + $0x16] sm:$0x1]
      %v1435 = vld [vmem:[%s197 + $0x1a] sm:$0x1]
      %v1436 = vld [vmem:[%s197 + $0x1e] sm:$0x1]
      %v1437 = vld [vmem:[%s197 + $0x22] sm:$0x1]
      %v1438 = vld [vmem:[%s197 + $0x26] sm:$0x1]
      %v1439 = vld [vmem:[%s197 + $0x2a] sm:$0x1]
      %v1440 = vld [vmem:[%s197 + $0x2e] sm:$0x1]
      %v1441 = vld [vmem:[%s197 + $0x32] sm:$0x1]
      %v1442 = vld [vmem:[%s197 + $0x36] sm:$0x1]
      %v1443 = vld [vmem:[%s197 + $0x3a] sm:$0x1]
      %v1444 = vld [vmem:[%s197 + $0x3e] sm:$0x1]
      %s1446 = vtos %v1429
      %v1447 = vstv %s1446
      %s1450 = vtos %v1430
      %v1451 = vstv %s1450
      %s1454 = vtos %v1431
      %v1455 = vstv %s1454
      %s1458 = vtos %v1432
      %v1459 = vstv %s1458
      %s1462 = vtos %v1433
      %v1463 = vstv %s1462
      %s1466 = vtos %v1434
      %v1467 = vstv %s1466
      %s1470 = vtos %v1435
      %v1471 = vstv %s1470
      %s1474 = vtos %v1436
      %v1475 = vstv %s1474
      %s1478 = vtos %v1437
      %v1479 = vstv %s1478
      %s1482 = vtos %v1438
      %v1483 = vstv %s1482
      %s1486 = vtos %v1439
      %v1487 = vstv %s1486
      %s1490 = vtos %v1440
      %v1491 = vstv %s1490
      %s1494 = vtos %v1441
      %v1495 = vstv %s1494
      %s1498 = vtos %v1442
      %v1499 = vstv %s1498
      %s1502 = vtos %v1443
      %v1503 = vstv %s1502
      %s1506 = vtos %v1444
      %v1507 = vstv %s1506
      %v1509 = vmul.f32 %v1413, %v1447
      %v1510 = vmul.f32 %v1414, %v1451
      %v1511 = vmul.f32 %v1415, %v1455
      %v1512 = vmul.f32 %v1416, %v1459
      %v1513 = vmul.f32 %v1417, %v1463
      %v1514 = vmul.f32 %v1418, %v1467
      %v1515 = vmul.f32 %v1419, %v1471
      %v1516 = vmul.f32 %v1420, %v1475
      %v1517 = vmul.f32 %v1421, %v1479
      %v1518 = vmul.f32 %v1422, %v1483
      %v1519 = vmul.f32 %v1423, %v1487
      %v1520 = vmul.f32 %v1424, %v1491
      %v1521 = vmul.f32 %v1425, %v1495
      %v1522 = vmul.f32 %v1426, %v1499
      %v1523 = vmul.f32 %v1427, %v1503
      %v1524 = vmul.f32 %v1428, %v1507
      %v1525 = vadd.f32 %v1397, %v1509
      %v1526 = vadd.f32 %v1398, %v1510
      %v1527 = vadd.f32 %v1399, %v1511
      %v1528 = vadd.f32 %v1400, %v1512
      %v1529 = vadd.f32 %v1401, %v1513
      %v1530 = vadd.f32 %v1402, %v1514
      %v1531 = vadd.f32 %v1403, %v1515
      %v1532 = vadd.f32 %v1404, %v1516
      %v1533 = vadd.f32 %v1405, %v1517
      %v1534 = vadd.f32 %v1406, %v1518
      %v1535 = vadd.f32 %v1407, %v1519
      %v1536 = vadd.f32 %v1408, %v1520
      %v1537 = vadd.f32 %v1409, %v1521
      %v1538 = vadd.f32 %v1410, %v1522
      %v1539 = vadd.f32 %v1411, %v1523
      %v1540 = vadd.f32 %v1412, %v1524
      %1541 = vrot.lane.b32.xlu0 %v1429, 127
      %v1542 = vpop.permute.xlu0 %1541
      %1543 = vrot.lane.b32.xlu0 %v1430, 127
      %v1544 = vpop.permute.xlu0 %1543
      %1545 = vrot.lane.b32.xlu0 %v1431, 127
      %v1546 = vpop.permute.xlu0 %1545
      %1547 = vrot.lane.b32.xlu0 %v1432, 127
      %v1548 = vpop.permute.xlu0 %1547
      %1549 = vrot.lane.b32.xlu0 %v1433, 127
      %v1550 = vpop.permute.xlu0 %1549
      %1551 = vrot.lane.b32.xlu0 %v1434, 127
      %v1552 = vpop.permute.xlu0 %1551
      %1553 = vrot.lane.b32.xlu0 %v1435, 127
      %v1554 = vpop.permute.xlu0 %1553
      %1555 = vrot.lane.b32.xlu0 %v1436, 127
      %v1556 = vpop.permute.xlu0 %1555
      %1557 = vrot.lane.b32.xlu0 %v1437, 127
      %v1558 = vpop.permute.xlu0 %1557
      %1559 = vrot.lane.b32.xlu0 %v1438, 127
      %v1560 = vpop.permute.xlu0 %1559
      %1561 = vrot.lane.b32.xlu0 %v1439, 127
      %v1562 = vpop.permute.xlu0 %1561
      %1563 = vrot.lane.b32.xlu0 %v1440, 127
      %v1564 = vpop.permute.xlu0 %1563
      %1565 = vrot.lane.b32.xlu0 %v1441, 127
      %v1566 = vpop.permute.xlu0 %1565
      %1567 = vrot.lane.b32.xlu0 %v1442, 127
      %v1568 = vpop.permute.xlu0 %1567
      %1569 = vrot.lane.b32.xlu0 %v1443, 127
      %v1570 = vpop.permute.xlu0 %1569
      %1571 = vrot.lane.b32.xlu0 %v1444, 127
      %v1572 = vpop.permute.xlu0 %1571
      %s1573 = vtos %v1542
      %v1574 = vstv %s1573
      %s1576 = vtos %v1544
      %v1577 = vstv %s1576
      %s1579 = vtos %v1546
      %v1580 = vstv %s1579
      %s1582 = vtos %v1548
      %v1583 = vstv %s1582
      %s1585 = vtos %v1550
      %v1586 = vstv %s1585
      %s1588 = vtos %v1552
      %v1589 = vstv %s1588
      %s1591 = vtos %v1554
      %v1592 = vstv %s1591
      %s1594 = vtos %v1556
      %v1595 = vstv %s1594
      %s1597 = vtos %v1558
      %v1598 = vstv %s1597
      %s1600 = vtos %v1560
      %v1601 = vstv %s1600
      %s1603 = vtos %v1562
      %v1604 = vstv %s1603
      %s1606 = vtos %v1564
      %v1607 = vstv %s1606
      %s1609 = vtos %v1566
      %v1610 = vstv %s1609
      %s1612 = vtos %v1568
      %v1613 = vstv %s1612
      %s1615 = vtos %v1570
      %v1616 = vstv %s1615
      %s1618 = vtos %v1572
      %v1619 = vstv %s1618
      %v1621 = vmul.f32 %v1413, %v1574
      %v1622 = vmul.f32 %v1414, %v1577
      %v1623 = vmul.f32 %v1415, %v1580
      %v1624 = vmul.f32 %v1416, %v1583
      %v1625 = vmul.f32 %v1417, %v1586
      %v1626 = vmul.f32 %v1418, %v1589
      %v1627 = vmul.f32 %v1419, %v1592
      %v1628 = vmul.f32 %v1420, %v1595
      %v1629 = vmul.f32 %v1421, %v1598
      %v1630 = vmul.f32 %v1422, %v1601
      %v1631 = vmul.f32 %v1423, %v1604
      %v1632 = vmul.f32 %v1424, %v1607
      %v1633 = vmul.f32 %v1425, %v1610
      %v1634 = vmul.f32 %v1426, %v1613
      %v1635 = vmul.f32 %v1427, %v1616
      %v1636 = vmul.f32 %v1428, %v1619
      %1653 = vrot.lane.b32.xlu0 %v1621, 127
      %v1654 = vpop.permute.xlu0 %1653
      %1655 = vrot.lane.b32.xlu0 %v1622, 127
      %v1656 = vpop.permute.xlu0 %1655
      %1657 = vrot.lane.b32.xlu0 %v1623, 127
      %v1658 = vpop.permute.xlu0 %1657
      %1659 = vrot.lane.b32.xlu0 %v1624, 127
      %v1660 = vpop.permute.xlu0 %1659
      %1661 = vrot.lane.b32.xlu0 %v1625, 127
      %v1662 = vpop.permute.xlu0 %1661
      %1663 = vrot.lane.b32.xlu0 %v1626, 127
      %v1664 = vpop.permute.xlu0 %1663
      %1665 = vrot.lane.b32.xlu0 %v1627, 127
      %v1666 = vpop.permute.xlu0 %1665
      %1667 = vrot.lane.b32.xlu0 %v1628, 127
      %v1668 = vpop.permute.xlu0 %1667
      %1669 = vrot.lane.b32.xlu0 %v1629, 127
      %v1670 = vpop.permute.xlu0 %1669
      %1671 = vrot.lane.b32.xlu0 %v1630, 127
      %v1672 = vpop.permute.xlu0 %1671
      %1673 = vrot.lane.b32.xlu0 %v1631, 127
      %v1674 = vpop.permute.xlu0 %1673
      %1675 = vrot.lane.b32.xlu0 %v1632, 127
      %v1676 = vpop.permute.xlu0 %1675
      %1677 = vrot.lane.b32.xlu0 %v1633, 127
      %v1678 = vpop.permute.xlu0 %1677
      %1679 = vrot.lane.b32.xlu0 %v1634, 127
      %v1680 = vpop.permute.xlu0 %1679
      %1681 = vrot.lane.b32.xlu0 %v1635, 127
      %v1682 = vpop.permute.xlu0 %1681
      %1683 = vrot.lane.b32.xlu0 %v1636, 127
      %v1684 = vpop.permute.xlu0 %1683
      %v1701 = vadd.f32 %v1525, %v1654
      %v1702 = vadd.f32 %v1526, %v1656
      %v1703 = vadd.f32 %v1527, %v1658
      %v1704 = vadd.f32 %v1528, %v1660
      %v1705 = vadd.f32 %v1529, %v1662
      %v1706 = vadd.f32 %v1530, %v1664
      %v1707 = vadd.f32 %v1531, %v1666
      %v1708 = vadd.f32 %v1532, %v1668
      %v1709 = vadd.f32 %v1533, %v1670
      %v1710 = vadd.f32 %v1534, %v1672
      %v1711 = vadd.f32 %v1535, %v1674
      %v1712 = vadd.f32 %v1536, %v1676
      %v1713 = vadd.f32 %v1537, %v1678
      %v1714 = vadd.f32 %v1538, %v1680
      %v1715 = vadd.f32 %v1539, %v1682
      %v1716 = vadd.f32 %v1540, %v1684
      %1717 = vrot.lane.b32.xlu0 %v1429, 126
      %v1718 = vpop.permute.xlu0 %1717
      %1719 = vrot.lane.b32.xlu0 %v1430, 126
      %v1720 = vpop.permute.xlu0 %1719
      %1721 = vrot.lane.b32.xlu0 %v1431, 126
      %v1722 = vpop.permute.xlu0 %1721
      %1723 = vrot.lane.b32.xlu0 %v1432, 126
      %v1724 = vpop.permute.xlu0 %1723
      %1725 = vrot.lane.b32.xlu0 %v1433, 126
      %v1726 = vpop.permute.xlu0 %1725
      %1727 = vrot.lane.b32.xlu0 %v1434, 126
      %v1728 = vpop.permute.xlu0 %1727
      %1729 = vrot.lane.b32.xlu0 %v1435, 126
      %v1730 = vpop.permute.xlu0 %1729
      %1731 = vrot.lane.b32.xlu0 %v1436, 126
      %v1732 = vpop.permute.xlu0 %1731
      %1733 = vrot.lane.b32.xlu0 %v1437, 126
      %v1734 = vpop.permute.xlu0 %1733
      %1735 = vrot.lane.b32.xlu0 %v1438, 126
      %v1736 = vpop.permute.xlu0 %1735
      %1737 = vrot.lane.b32.xlu0 %v1439, 126
      %v1738 = vpop.permute.xlu0 %1737
      %1739 = vrot.lane.b32.xlu0 %v1440, 126
      %v1740 = vpop.permute.xlu0 %1739
      %1741 = vrot.lane.b32.xlu0 %v1441, 126
      %v1742 = vpop.permute.xlu0 %1741
      %1743 = vrot.lane.b32.xlu0 %v1442, 126
      %v1744 = vpop.permute.xlu0 %1743
      %1745 = vrot.lane.b32.xlu0 %v1443, 126
      %v1746 = vpop.permute.xlu0 %1745
      %1747 = vrot.lane.b32.xlu0 %v1444, 126
      %v1748 = vpop.permute.xlu0 %1747
      %s1749 = vtos %v1718
      %v1750 = vstv %s1749
      %s1752 = vtos %v1720
      %v1753 = vstv %s1752
      %s1755 = vtos %v1722
      %v1756 = vstv %s1755
      %s1758 = vtos %v1724
      %v1759 = vstv %s1758
      %s1761 = vtos %v1726
      %v1762 = vstv %s1761
      %s1764 = vtos %v1728
      %v1765 = vstv %s1764
      %s1767 = vtos %v1730
      %v1768 = vstv %s1767
      %s1770 = vtos %v1732
      %v1771 = vstv %s1770
      %s1773 = vtos %v1734
      %v1774 = vstv %s1773
      %s1776 = vtos %v1736
      %v1777 = vstv %s1776
      %s1779 = vtos %v1738
      %v1780 = vstv %s1779
      %s1782 = vtos %v1740
      %v1783 = vstv %s1782
      %s1785 = vtos %v1742
      %v1786 = vstv %s1785
      %s1788 = vtos %v1744
      %v1789 = vstv %s1788
      %s1791 = vtos %v1746
      %v1792 = vstv %s1791
      %s1794 = vtos %v1748
      %v1795 = vstv %s1794
      %v1797 = vmul.f32 %v1413, %v1750
      %v1798 = vmul.f32 %v1414, %v1753
      %v1799 = vmul.f32 %v1415, %v1756
      %v1800 = vmul.f32 %v1416, %v1759
      %v1801 = vmul.f32 %v1417, %v1762
      %v1802 = vmul.f32 %v1418, %v1765
      %v1803 = vmul.f32 %v1419, %v1768
      %v1804 = vmul.f32 %v1420, %v1771
      %v1805 = vmul.f32 %v1421, %v1774
      %v1806 = vmul.f32 %v1422, %v1777
      %v1807 = vmul.f32 %v1423, %v1780
      %v1808 = vmul.f32 %v1424, %v1783
      %v1809 = vmul.f32 %v1425, %v1786
      %v1810 = vmul.f32 %v1426, %v1789
      %v1811 = vmul.f32 %v1427, %v1792
      %v1812 = vmul.f32 %v1428, %v1795
      %1829 = vrot.lane.b32.xlu0 %v1797, 126
      %v1830 = vpop.permute.xlu0 %1829
      %1831 = vrot.lane.b32.xlu0 %v1798, 126
      %v1832 = vpop.permute.xlu0 %1831
      %1833 = vrot.lane.b32.xlu0 %v1799, 126
      %v1834 = vpop.permute.xlu0 %1833
      %1835 = vrot.lane.b32.xlu0 %v1800, 126
      %v1836 = vpop.permute.xlu0 %1835
      %1837 = vrot.lane.b32.xlu0 %v1801, 126
      %v1838 = vpop.permute.xlu0 %1837
      %1839 = vrot.lane.b32.xlu0 %v1802, 126
      %v1840 = vpop.permute.xlu0 %1839
      %1841 = vrot.lane.b32.xlu0 %v1803, 126
      %v1842 = vpop.permute.xlu0 %1841
      %1843 = vrot.lane.b32.xlu0 %v1804, 126
      %v1844 = vpop.permute.xlu0 %1843
      %1845 = vrot.lane.b32.xlu0 %v1805, 126
      %v1846 = vpop.permute.xlu0 %1845
      %1847 = vrot.lane.b32.xlu0 %v1806, 126
      %v1848 = vpop.permute.xlu0 %1847
      %1849 = vrot.lane.b32.xlu0 %v1807, 126
      %v1850 = vpop.permute.xlu0 %1849
      %1851 = vrot.lane.b32.xlu0 %v1808, 126
      %v1852 = vpop.permute.xlu0 %1851
      %1853 = vrot.lane.b32.xlu0 %v1809, 126
      %v1854 = vpop.permute.xlu0 %1853
      %1855 = vrot.lane.b32.xlu0 %v1810, 126
      %v1856 = vpop.permute.xlu0 %1855
      %1857 = vrot.lane.b32.xlu0 %v1811, 126
      %v1858 = vpop.permute.xlu0 %1857
      %1859 = vrot.lane.b32.xlu0 %v1812, 126
      %v1860 = vpop.permute.xlu0 %1859
      %v1877 = vadd.f32 %v1701, %v1830
      %v1878 = vadd.f32 %v1702, %v1832
      %v1879 = vadd.f32 %v1703, %v1834
      %v1880 = vadd.f32 %v1704, %v1836
      %v1881 = vadd.f32 %v1705, %v1838
      %v1882 = vadd.f32 %v1706, %v1840
      %v1883 = vadd.f32 %v1707, %v1842
      %v1884 = vadd.f32 %v1708, %v1844
      %v1885 = vadd.f32 %v1709, %v1846
      %v1886 = vadd.f32 %v1710, %v1848
      %v1887 = vadd.f32 %v1711, %v1850
      %v1888 = vadd.f32 %v1712, %v1852
      %v1889 = vadd.f32 %v1713, %v1854
      %v1890 = vadd.f32 %v1714, %v1856
      %v1891 = vadd.f32 %v1715, %v1858
      %v1892 = vadd.f32 %v1716, %v1860
      %vm1893 = vcmask 130048
      %1894 = vst.msk [vmem:[%s208] sm:$0xff] %vm1893, %v1877
      %1895 = vst.msk [vmem:[%s208 + $0x10] sm:$0xff] %vm1893, %v1878
      %1896 = vst.msk [vmem:[%s208 + $0x20] sm:$0xff] %vm1893, %v1879
      %1897 = vst.msk [vmem:[%s208 + $0x30] sm:$0xff] %vm1893, %v1880
      %1898 = vst.msk [vmem:[%s208 + $0x40] sm:$0xff] %vm1893, %v1881
      %1899 = vst.msk [vmem:[%s208 + $0x50] sm:$0xff] %vm1893, %v1882
      %1900 = vst.msk [vmem:[%s208 + $0x60] sm:$0xff] %vm1893, %v1883
      %1901 = vst.msk [vmem:[%s208 + $0x70] sm:$0xff] %vm1893, %v1884
      %1902 = vst.msk [vmem:[%s208 + $0x80] sm:$0xff] %vm1893, %v1885
      %1903 = vst.msk [vmem:[%s208 + $0x90] sm:$0xff] %vm1893, %v1886
      %1904 = vst.msk [vmem:[%s208 + $0xa0] sm:$0xff] %vm1893, %v1887
      %1905 = vst.msk [vmem:[%s208 + $0xb0] sm:$0xff] %vm1893, %v1888
      %1906 = vst.msk [vmem:[%s208 + $0xc0] sm:$0xff] %vm1893, %v1889
      %1907 = vst.msk [vmem:[%s208 + $0xd0] sm:$0xff] %vm1893, %v1890
      %1908 = vst.msk [vmem:[%s208 + $0xe0] sm:$0xff] %vm1893, %v1891
      %1909 = vst.msk [vmem:[%s208 + $0xf0] sm:$0xff] %vm1893, %v1892
      %v1910 = vld [vmem:[#allocation2 + $0x8] sm:$0xff]
      %v1911 = vld [vmem:[#allocation2 + $0x20] sm:$0xff]
      %v1912 = vld [vmem:[#allocation2 + $0x38] sm:$0xff]
      %v1913 = vld [vmem:[#allocation2 + $0x50] sm:$0xff]
      %v1914 = vld [vmem:[#allocation2 + $0x68] sm:$0xff]
      %v1915 = vld [vmem:[#allocation2 + $0x80] sm:$0xff]
      %v1916 = vld [vmem:[#allocation2 + $0x98] sm:$0xff]
      %v1917 = vld [vmem:[#allocation2 + $0xb0] sm:$0xff]
      %v1918 = vld [vmem:[#allocation2 + $0xc8] sm:$0xff]
      %v1919 = vld [vmem:[#allocation2 + $0xe0] sm:$0xff]
      %v1920 = vld [vmem:[#allocation2 + $0xf8] sm:$0xff]
      %v1921 = vld [vmem:[#allocation2 + $0x110] sm:$0xff]
      %v1922 = vld [vmem:[#allocation2 + $0x128] sm:$0xff]
      %v1923 = vld [vmem:[#allocation2 + $0x140] sm:$0xff]
      %v1924 = vld [vmem:[#allocation2 + $0x158] sm:$0xff]
      %v1925 = vld [vmem:[#allocation2 + $0x170] sm:$0xff]
      %v1926 = vld [vmem:[%s197] sm:$0x1]
      %v1927 = vld [vmem:[%s197 + $0x4] sm:$0x1]
      %v1928 = vld [vmem:[%s197 + $0x8] sm:$0x1]
      %v1929 = vld [vmem:[%s197 + $0xc] sm:$0x1]
      %v1930 = vld [vmem:[%s197 + $0x10] sm:$0x1]
      %v1931 = vld [vmem:[%s197 + $0x14] sm:$0x1]
      %v1932 = vld [vmem:[%s197 + $0x18] sm:$0x1]
      %v1933 = vld [vmem:[%s197 + $0x1c] sm:$0x1]
      %v1934 = vld [vmem:[%s197 + $0x20] sm:$0x1]
      %v1935 = vld [vmem:[%s197 + $0x24] sm:$0x1]
      %v1936 = vld [vmem:[%s197 + $0x28] sm:$0x1]
      %v1937 = vld [vmem:[%s197 + $0x2c] sm:$0x1]
      %v1938 = vld [vmem:[%s197 + $0x30] sm:$0x1]
      %v1939 = vld [vmem:[%s197 + $0x34] sm:$0x1]
      %v1940 = vld [vmem:[%s197 + $0x38] sm:$0x1]
      %v1941 = vld [vmem:[%s197 + $0x3c] sm:$0x1]
      %s1943 = vtos %v1926
      %v1944 = vstv %s1943
      %s1947 = vtos %v1927
      %v1948 = vstv %s1947
      %s1951 = vtos %v1928
      %v1952 = vstv %s1951
      %s1955 = vtos %v1929
      %v1956 = vstv %s1955
      %s1959 = vtos %v1930
      %v1960 = vstv %s1959
      %s1963 = vtos %v1931
      %v1964 = vstv %s1963
      %s1967 = vtos %v1932
      %v1968 = vstv %s1967
      %s1971 = vtos %v1933
      %v1972 = vstv %s1971
      %s1975 = vtos %v1934
      %v1976 = vstv %s1975
      %s1979 = vtos %v1935
      %v1980 = vstv %s1979
      %s1983 = vtos %v1936
      %v1984 = vstv %s1983
      %s1987 = vtos %v1937
      %v1988 = vstv %s1987
      %s1991 = vtos %v1938
      %v1992 = vstv %s1991
      %s1995 = vtos %v1939
      %v1996 = vstv %s1995
      %s1999 = vtos %v1940
      %v2000 = vstv %s1999
      %s2003 = vtos %v1941
      %v2004 = vstv %s2003
      %v2006 = vmul.f32 %v1910, %v1944
      %v2007 = vmul.f32 %v1911, %v1948
      %v2008 = vmul.f32 %v1912, %v1952
      %v2009 = vmul.f32 %v1913, %v1956
      %v2010 = vmul.f32 %v1914, %v1960
      %v2011 = vmul.f32 %v1915, %v1964
      %v2012 = vmul.f32 %v1916, %v1968
      %v2013 = vmul.f32 %v1917, %v1972
      %v2014 = vmul.f32 %v1918, %v1976
      %v2015 = vmul.f32 %v1919, %v1980
      %v2016 = vmul.f32 %v1920, %v1984
      %v2017 = vmul.f32 %v1921, %v1988
      %v2018 = vmul.f32 %v1922, %v1992
      %v2019 = vmul.f32 %v1923, %v1996
      %v2020 = vmul.f32 %v1924, %v2000
      %v2021 = vmul.f32 %v1925, %v2004
      %v2022 = vadd.f32 %v2006, 0.0
      %v2023 = vadd.f32 %v2007, 0.0
      %v2024 = vadd.f32 %v2008, 0.0
      %v2025 = vadd.f32 %v2009, 0.0
      %v2026 = vadd.f32 %v2010, 0.0
      %v2027 = vadd.f32 %v2011, 0.0
      %v2028 = vadd.f32 %v2012, 0.0
      %v2029 = vadd.f32 %v2013, 0.0
      %v2030 = vadd.f32 %v2014, 0.0
      %v2031 = vadd.f32 %v2015, 0.0
      %v2032 = vadd.f32 %v2016, 0.0
      %v2033 = vadd.f32 %v2017, 0.0
      %v2034 = vadd.f32 %v2018, 0.0
      %v2035 = vadd.f32 %v2019, 0.0
      %v2036 = vadd.f32 %v2020, 0.0
      %v2037 = vadd.f32 %v2021, 0.0
      %2038 = vrot.lane.b32.xlu0 %v1926, 127
      %v2039 = vpop.permute.xlu0 %2038
      %2040 = vrot.lane.b32.xlu0 %v1927, 127
      %v2041 = vpop.permute.xlu0 %2040
      %2042 = vrot.lane.b32.xlu0 %v1928, 127
      %v2043 = vpop.permute.xlu0 %2042
      %2044 = vrot.lane.b32.xlu0 %v1929, 127
      %v2045 = vpop.permute.xlu0 %2044
      %2046 = vrot.lane.b32.xlu0 %v1930, 127
      %v2047 = vpop.permute.xlu0 %2046
      %2048 = vrot.lane.b32.xlu0 %v1931, 127
      %v2049 = vpop.permute.xlu0 %2048
      %2050 = vrot.lane.b32.xlu0 %v1932, 127
      %v2051 = vpop.permute.xlu0 %2050
      %2052 = vrot.lane.b32.xlu0 %v1933, 127
      %v2053 = vpop.permute.xlu0 %2052
      %2054 = vrot.lane.b32.xlu0 %v1934, 127
      %v2055 = vpop.permute.xlu0 %2054
      %2056 = vrot.lane.b32.xlu0 %v1935, 127
      %v2057 = vpop.permute.xlu0 %2056
      %2058 = vrot.lane.b32.xlu0 %v1936, 127
      %v2059 = vpop.permute.xlu0 %2058
      %2060 = vrot.lane.b32.xlu0 %v1937, 127
      %v2061 = vpop.permute.xlu0 %2060
      %2062 = vrot.lane.b32.xlu0 %v1938, 127
      %v2063 = vpop.permute.xlu0 %2062
      %2064 = vrot.lane.b32.xlu0 %v1939, 127
      %v2065 = vpop.permute.xlu0 %2064
      %2066 = vrot.lane.b32.xlu0 %v1940, 127
      %v2067 = vpop.permute.xlu0 %2066
      %2068 = vrot.lane.b32.xlu0 %v1941, 127
      %v2069 = vpop.permute.xlu0 %2068
      %s2070 = vtos %v2039
      %v2071 = vstv %s2070
      %s2073 = vtos %v2041
      %v2074 = vstv %s2073
      %s2076 = vtos %v2043
      %v2077 = vstv %s2076
      %s2079 = vtos %v2045
      %v2080 = vstv %s2079
      %s2082 = vtos %v2047
      %v2083 = vstv %s2082
      %s2085 = vtos %v2049
      %v2086 = vstv %s2085
      %s2088 = vtos %v2051
      %v2089 = vstv %s2088
      %s2091 = vtos %v2053
      %v2092 = vstv %s2091
      %s2094 = vtos %v2055
      %v2095 = vstv %s2094
      %s2097 = vtos %v2057
      %v2098 = vstv %s2097
      %s2100 = vtos %v2059
      %v2101 = vstv %s2100
      %s2103 = vtos %v2061
      %v2104 = vstv %s2103
      %s2106 = vtos %v2063
      %v2107 = vstv %s2106
      %s2109 = vtos %v2065
      %v2110 = vstv %s2109
      %s2112 = vtos %v2067
      %v2113 = vstv %s2112
      %s2115 = vtos %v2069
      %v2116 = vstv %s2115
      %v2118 = vmul.f32 %v1910, %v2071
      %v2119 = vmul.f32 %v1911, %v2074
      %v2120 = vmul.f32 %v1912, %v2077
      %v2121 = vmul.f32 %v1913, %v2080
      %v2122 = vmul.f32 %v1914, %v2083
      %v2123 = vmul.f32 %v1915, %v2086
      %v2124 = vmul.f32 %v1916, %v2089
      %v2125 = vmul.f32 %v1917, %v2092
      %v2126 = vmul.f32 %v1918, %v2095
      %v2127 = vmul.f32 %v1919, %v2098
      %v2128 = vmul.f32 %v1920, %v2101
      %v2129 = vmul.f32 %v1921, %v2104
      %v2130 = vmul.f32 %v1922, %v2107
      %v2131 = vmul.f32 %v1923, %v2110
      %v2132 = vmul.f32 %v1924, %v2113
      %v2133 = vmul.f32 %v1925, %v2116
      %2150 = vrot.lane.b32.xlu0 %v2118, 127
      %v2151 = vpop.permute.xlu0 %2150
      %2152 = vrot.lane.b32.xlu0 %v2119, 127
      %v2153 = vpop.permute.xlu0 %2152
      %2154 = vrot.lane.b32.xlu0 %v2120, 127
      %v2155 = vpop.permute.xlu0 %2154
      %2156 = vrot.lane.b32.xlu0 %v2121, 127
      %v2157 = vpop.permute.xlu0 %2156
      %2158 = vrot.lane.b32.xlu0 %v2122, 127
      %v2159 = vpop.permute.xlu0 %2158
      %2160 = vrot.lane.b32.xlu0 %v2123, 127
      %v2161 = vpop.permute.xlu0 %2160
      %2162 = vrot.lane.b32.xlu0 %v2124, 127
      %v2163 = vpop.permute.xlu0 %2162
      %2164 = vrot.lane.b32.xlu0 %v2125, 127
      %v2165 = vpop.permute.xlu0 %2164
      %2166 = vrot.lane.b32.xlu0 %v2126, 127
      %v2167 = vpop.permute.xlu0 %2166
      %2168 = vrot.lane.b32.xlu0 %v2127, 127
      %v2169 = vpop.permute.xlu0 %2168
      %2170 = vrot.lane.b32.xlu0 %v2128, 127
      %v2171 = vpop.permute.xlu0 %2170
      %2172 = vrot.lane.b32.xlu0 %v2129, 127
      %v2173 = vpop.permute.xlu0 %2172
      %2174 = vrot.lane.b32.xlu0 %v2130, 127
      %v2175 = vpop.permute.xlu0 %2174
      %2176 = vrot.lane.b32.xlu0 %v2131, 127
      %v2177 = vpop.permute.xlu0 %2176
      %2178 = vrot.lane.b32.xlu0 %v2132, 127
      %v2179 = vpop.permute.xlu0 %2178
      %2180 = vrot.lane.b32.xlu0 %v2133, 127
      %v2181 = vpop.permute.xlu0 %2180
      %v2198 = vadd.f32 %v2022, %v2151
      %v2199 = vadd.f32 %v2023, %v2153
      %v2200 = vadd.f32 %v2024, %v2155
      %v2201 = vadd.f32 %v2025, %v2157
      %v2202 = vadd.f32 %v2026, %v2159
      %v2203 = vadd.f32 %v2027, %v2161
      %v2204 = vadd.f32 %v2028, %v2163
      %v2205 = vadd.f32 %v2029, %v2165
      %v2206 = vadd.f32 %v2030, %v2167
      %v2207 = vadd.f32 %v2031, %v2169
      %v2208 = vadd.f32 %v2032, %v2171
      %v2209 = vadd.f32 %v2033, %v2173
      %v2210 = vadd.f32 %v2034, %v2175
      %v2211 = vadd.f32 %v2035, %v2177
      %v2212 = vadd.f32 %v2036, %v2179
      %v2213 = vadd.f32 %v2037, %v2181
      %2214 = vrot.lane.b32.xlu0 %v1926, 126
      %v2215 = vpop.permute.xlu0 %2214
      %2216 = vrot.lane.b32.xlu0 %v1927, 126
      %v2217 = vpop.permute.xlu0 %2216
      %2218 = vrot.lane.b32.xlu0 %v1928, 126
      %v2219 = vpop.permute.xlu0 %2218
      %2220 = vrot.lane.b32.xlu0 %v1929, 126
      %v2221 = vpop.permute.xlu0 %2220
      %2222 = vrot.lane.b32.xlu0 %v1930, 126
      %v2223 = vpop.permute.xlu0 %2222
      %2224 = vrot.lane.b32.xlu0 %v1931, 126
      %v2225 = vpop.permute.xlu0 %2224
      %2226 = vrot.lane.b32.xlu0 %v1932, 126
      %v2227 = vpop.permute.xlu0 %2226
      %2228 = vrot.lane.b32.xlu0 %v1933, 126
      %v2229 = vpop.permute.xlu0 %2228
      %2230 = vrot.lane.b32.xlu0 %v1934, 126
      %v2231 = vpop.permute.xlu0 %2230
      %2232 = vrot.lane.b32.xlu0 %v1935, 126
      %v2233 = vpop.permute.xlu0 %2232
      %2234 = vrot.lane.b32.xlu0 %v1936, 126
      %v2235 = vpop.permute.xlu0 %2234
      %2236 = vrot.lane.b32.xlu0 %v1937, 126
      %v2237 = vpop.permute.xlu0 %2236
      %2238 = vrot.lane.b32.xlu0 %v1938, 126
      %v2239 = vpop.permute.xlu0 %2238
      %2240 = vrot.lane.b32.xlu0 %v1939, 126
      %v2241 = vpop.permute.xlu0 %2240
      %2242 = vrot.lane.b32.xlu0 %v1940, 126
      %v2243 = vpop.permute.xlu0 %2242
      %2244 = vrot.lane.b32.xlu0 %v1941, 126
      %v2245 = vpop.permute.xlu0 %2244
      %s2246 = vtos %v2215
      %v2247 = vstv %s2246
      %s2249 = vtos %v2217
      %v2250 = vstv %s2249
      %s2252 = vtos %v2219
      %v2253 = vstv %s2252
      %s2255 = vtos %v2221
      %v2256 = vstv %s2255
      %s2258 = vtos %v2223
      %v2259 = vstv %s2258
      %s2261 = vtos %v2225
      %v2262 = vstv %s2261
      %s2264 = vtos %v2227
      %v2265 = vstv %s2264
      %s2267 = vtos %v2229
      %v2268 = vstv %s2267
      %s2270 = vtos %v2231
      %v2271 = vstv %s2270
      %s2273 = vtos %v2233
      %v2274 = vstv %s2273
      %s2276 = vtos %v2235
      %v2277 = vstv %s2276
      %s2279 = vtos %v2237
      %v2280 = vstv %s2279
      %s2282 = vtos %v2239
      %v2283 = vstv %s2282
      %s2285 = vtos %v2241
      %v2286 = vstv %s2285
      %s2288 = vtos %v2243
      %v2289 = vstv %s2288
      %s2291 = vtos %v2245
      %v2292 = vstv %s2291
      %v2294 = vmul.f32 %v1910, %v2247
      %v2295 = vmul.f32 %v1911, %v2250
      %v2296 = vmul.f32 %v1912, %v2253
      %v2297 = vmul.f32 %v1913, %v2256
      %v2298 = vmul.f32 %v1914, %v2259
      %v2299 = vmul.f32 %v1915, %v2262
      %v2300 = vmul.f32 %v1916, %v2265
      %v2301 = vmul.f32 %v1917, %v2268
      %v2302 = vmul.f32 %v1918, %v2271
      %v2303 = vmul.f32 %v1919, %v2274
      %v2304 = vmul.f32 %v1920, %v2277
      %v2305 = vmul.f32 %v1921, %v2280
      %v2306 = vmul.f32 %v1922, %v2283
      %v2307 = vmul.f32 %v1923, %v2286
      %v2308 = vmul.f32 %v1924, %v2289
      %v2309 = vmul.f32 %v1925, %v2292
      %2326 = vrot.lane.b32.xlu0 %v2294, 126
      %v2327 = vpop.permute.xlu0 %2326
      %2328 = vrot.lane.b32.xlu0 %v2295, 126
      %v2329 = vpop.permute.xlu0 %2328
      %2330 = vrot.lane.b32.xlu0 %v2296, 126
      %v2331 = vpop.permute.xlu0 %2330
      %2332 = vrot.lane.b32.xlu0 %v2297, 126
      %v2333 = vpop.permute.xlu0 %2332
      %2334 = vrot.lane.b32.xlu0 %v2298, 126
      %v2335 = vpop.permute.xlu0 %2334
      %2336 = vrot.lane.b32.xlu0 %v2299, 126
      %v2337 = vpop.permute.xlu0 %2336
      %2338 = vrot.lane.b32.xlu0 %v2300, 126
      %v2339 = vpop.permute.xlu0 %2338
      %2340 = vrot.lane.b32.xlu0 %v2301, 126
      %v2341 = vpop.permute.xlu0 %2340
      %2342 = vrot.lane.b32.xlu0 %v2302, 126
      %v2343 = vpop.permute.xlu0 %2342
      %2344 = vrot.lane.b32.xlu0 %v2303, 126
      %v2345 = vpop.permute.xlu0 %2344
      %2346 = vrot.lane.b32.xlu0 %v2304, 126
      %v2347 = vpop.permute.xlu0 %2346
      %2348 = vrot.lane.b32.xlu0 %v2305, 126
      %v2349 = vpop.permute.xlu0 %2348
      %2350 = vrot.lane.b32.xlu0 %v2306, 126
      %v2351 = vpop.permute.xlu0 %2350
      %2352 = vrot.lane.b32.xlu0 %v2307, 126
      %v2353 = vpop.permute.xlu0 %2352
      %2354 = vrot.lane.b32.xlu0 %v2308, 126
      %v2355 = vpop.permute.xlu0 %2354
      %2356 = vrot.lane.b32.xlu0 %v2309, 126
      %v2357 = vpop.permute.xlu0 %2356
      %v2374 = vadd.f32 %v2198, %v2327
      %v2375 = vadd.f32 %v2199, %v2329
      %v2376 = vadd.f32 %v2200, %v2331
      %v2377 = vadd.f32 %v2201, %v2333
      %v2378 = vadd.f32 %v2202, %v2335
      %v2379 = vadd.f32 %v2203, %v2337
      %v2380 = vadd.f32 %v2204, %v2339
      %v2381 = vadd.f32 %v2205, %v2341
      %v2382 = vadd.f32 %v2206, %v2343
      %v2383 = vadd.f32 %v2207, %v2345
      %v2384 = vadd.f32 %v2208, %v2347
      %v2385 = vadd.f32 %v2209, %v2349
      %v2386 = vadd.f32 %v2210, %v2351
      %v2387 = vadd.f32 %v2211, %v2353
      %v2388 = vadd.f32 %v2212, %v2355
      %v2389 = vadd.f32 %v2213, %v2357
      %v2390 = vld [vmem:[#allocation2 + $0x9] sm:$0xff]
      %v2391 = vld [vmem:[#allocation2 + $0x21] sm:$0xff]
      %v2392 = vld [vmem:[#allocation2 + $0x39] sm:$0xff]
      %v2393 = vld [vmem:[#allocation2 + $0x51] sm:$0xff]
      %v2394 = vld [vmem:[#allocation2 + $0x69] sm:$0xff]
      %v2395 = vld [vmem:[#allocation2 + $0x81] sm:$0xff]
      %v2396 = vld [vmem:[#allocation2 + $0x99] sm:$0xff]
      %v2397 = vld [vmem:[#allocation2 + $0xb1] sm:$0xff]
      %v2398 = vld [vmem:[#allocation2 + $0xc9] sm:$0xff]
      %v2399 = vld [vmem:[#allocation2 + $0xe1] sm:$0xff]
      %v2400 = vld [vmem:[#allocation2 + $0xf9] sm:$0xff]
      %v2401 = vld [vmem:[#allocation2 + $0x111] sm:$0xff]
      %v2402 = vld [vmem:[#allocation2 + $0x129] sm:$0xff]
      %v2403 = vld [vmem:[#allocation2 + $0x141] sm:$0xff]
      %v2404 = vld [vmem:[#allocation2 + $0x159] sm:$0xff]
      %v2405 = vld [vmem:[#allocation2 + $0x171] sm:$0xff]
      %v2406 = vld [vmem:[%s197 + $0x1] sm:$0x1]
      %v2407 = vld [vmem:[%s197 + $0x5] sm:$0x1]
      %v2408 = vld [vmem:[%s197 + $0x9] sm:$0x1]
      %v2409 = vld [vmem:[%s197 + $0xd] sm:$0x1]
      %v2410 = vld [vmem:[%s197 + $0x11] sm:$0x1]
      %v2411 = vld [vmem:[%s197 + $0x15] sm:$0x1]
      %v2412 = vld [vmem:[%s197 + $0x19] sm:$0x1]
      %v2413 = vld [vmem:[%s197 + $0x1d] sm:$0x1]
      %v2414 = vld [vmem:[%s197 + $0x21] sm:$0x1]
      %v2415 = vld [vmem:[%s197 + $0x25] sm:$0x1]
      %v2416 = vld [vmem:[%s197 + $0x29] sm:$0x1]
      %v2417 = vld [vmem:[%s197 + $0x2d] sm:$0x1]
      %v2418 = vld [vmem:[%s197 + $0x31] sm:$0x1]
      %v2419 = vld [vmem:[%s197 + $0x35] sm:$0x1]
      %v2420 = vld [vmem:[%s197 + $0x39] sm:$0x1]
      %v2421 = vld [vmem:[%s197 + $0x3d] sm:$0x1]
      %s2423 = vtos %v2406
      %v2424 = vstv %s2423
      %s2427 = vtos %v2407
      %v2428 = vstv %s2427
      %s2431 = vtos %v2408
      %v2432 = vstv %s2431
      %s2435 = vtos %v2409
      %v2436 = vstv %s2435
      %s2439 = vtos %v2410
      %v2440 = vstv %s2439
      %s2443 = vtos %v2411
      %v2444 = vstv %s2443
      %s2447 = vtos %v2412
      %v2448 = vstv %s2447
      %s2451 = vtos %v2413
      %v2452 = vstv %s2451
      %s2455 = vtos %v2414
      %v2456 = vstv %s2455
      %s2459 = vtos %v2415
      %v2460 = vstv %s2459
      %s2463 = vtos %v2416
      %v2464 = vstv %s2463
      %s2467 = vtos %v2417
      %v2468 = vstv %s2467
      %s2471 = vtos %v2418
      %v2472 = vstv %s2471
      %s2475 = vtos %v2419
      %v2476 = vstv %s2475
      %s2479 = vtos %v2420
      %v2480 = vstv %s2479
      %s2483 = vtos %v2421
      %v2484 = vstv %s2483
      %v2486 = vmul.f32 %v2390, %v2424
      %v2487 = vmul.f32 %v2391, %v2428
      %v2488 = vmul.f32 %v2392, %v2432
      %v2489 = vmul.f32 %v2393, %v2436
      %v2490 = vmul.f32 %v2394, %v2440
      %v2491 = vmul.f32 %v2395, %v2444
      %v2492 = vmul.f32 %v2396, %v2448
      %v2493 = vmul.f32 %v2397, %v2452
      %v2494 = vmul.f32 %v2398, %v2456
      %v2495 = vmul.f32 %v2399, %v2460
      %v2496 = vmul.f32 %v2400, %v2464
      %v2497 = vmul.f32 %v2401, %v2468
      %v2498 = vmul.f32 %v2402, %v2472
      %v2499 = vmul.f32 %v2403, %v2476
      %v2500 = vmul.f32 %v2404, %v2480
      %v2501 = vmul.f32 %v2405, %v2484
      %v2502 = vadd.f32 %v2374, %v2486
      %v2503 = vadd.f32 %v2375, %v2487
      %v2504 = vadd.f32 %v2376, %v2488
      %v2505 = vadd.f32 %v2377, %v2489
      %v2506 = vadd.f32 %v2378, %v2490
      %v2507 = vadd.f32 %v2379, %v2491
      %v2508 = vadd.f32 %v2380, %v2492
      %v2509 = vadd.f32 %v2381, %v2493
      %v2510 = vadd.f32 %v2382, %v2494
      %v2511 = vadd.f32 %v2383, %v2495
      %v2512 = vadd.f32 %v2384, %v2496
      %v2513 = vadd.f32 %v2385, %v2497
      %v2514 = vadd.f32 %v2386, %v2498
      %v2515 = vadd.f32 %v2387, %v2499
      %v2516 = vadd.f32 %v2388, %v2500
      %v2517 = vadd.f32 %v2389, %v2501
      %2518 = vrot.lane.b32.xlu0 %v2406, 127
      %v2519 = vpop.permute.xlu0 %2518
      %2520 = vrot.lane.b32.xlu0 %v2407, 127
      %v2521 = vpop.permute.xlu0 %2520
      %2522 = vrot.lane.b32.xlu0 %v2408, 127
      %v2523 = vpop.permute.xlu0 %2522
      %2524 = vrot.lane.b32.xlu0 %v2409, 127
      %v2525 = vpop.permute.xlu0 %2524
      %2526 = vrot.lane.b32.xlu0 %v2410, 127
      %v2527 = vpop.permute.xlu0 %2526
      %2528 = vrot.lane.b32.xlu0 %v2411, 127
      %v2529 = vpop.permute.xlu0 %2528
      %2530 = vrot.lane.b32.xlu0 %v2412, 127
      %v2531 = vpop.permute.xlu0 %2530
      %2532 = vrot.lane.b32.xlu0 %v2413, 127
      %v2533 = vpop.permute.xlu0 %2532
      %2534 = vrot.lane.b32.xlu0 %v2414, 127
      %v2535 = vpop.permute.xlu0 %2534
      %2536 = vrot.lane.b32.xlu0 %v2415, 127
      %v2537 = vpop.permute.xlu0 %2536
      %2538 = vrot.lane.b32.xlu0 %v2416, 127
      %v2539 = vpop.permute.xlu0 %2538
      %2540 = vrot.lane.b32.xlu0 %v2417, 127
      %v2541 = vpop.permute.xlu0 %2540
      %2542 = vrot.lane.b32.xlu0 %v2418, 127
      %v2543 = vpop.permute.xlu0 %2542
      %2544 = vrot.lane.b32.xlu0 %v2419, 127
      %v2545 = vpop.permute.xlu0 %2544
      %2546 = vrot.lane.b32.xlu0 %v2420, 127
      %v2547 = vpop.permute.xlu0 %2546
      %2548 = vrot.lane.b32.xlu0 %v2421, 127
      %v2549 = vpop.permute.xlu0 %2548
      %s2550 = vtos %v2519
      %v2551 = vstv %s2550
      %s2553 = vtos %v2521
      %v2554 = vstv %s2553
      %s2556 = vtos %v2523
      %v2557 = vstv %s2556
      %s2559 = vtos %v2525
      %v2560 = vstv %s2559
      %s2562 = vtos %v2527
      %v2563 = vstv %s2562
      %s2565 = vtos %v2529
      %v2566 = vstv %s2565
      %s2568 = vtos %v2531
      %v2569 = vstv %s2568
      %s2571 = vtos %v2533
      %v2572 = vstv %s2571
      %s2574 = vtos %v2535
      %v2575 = vstv %s2574
      %s2577 = vtos %v2537
      %v2578 = vstv %s2577
      %s2580 = vtos %v2539
      %v2581 = vstv %s2580
      %s2583 = vtos %v2541
      %v2584 = vstv %s2583
      %s2586 = vtos %v2543
      %v2587 = vstv %s2586
      %s2589 = vtos %v2545
      %v2590 = vstv %s2589
      %s2592 = vtos %v2547
      %v2593 = vstv %s2592
      %s2595 = vtos %v2549
      %v2596 = vstv %s2595
      %v2598 = vmul.f32 %v2390, %v2551
      %v2599 = vmul.f32 %v2391, %v2554
      %v2600 = vmul.f32 %v2392, %v2557
      %v2601 = vmul.f32 %v2393, %v2560
      %v2602 = vmul.f32 %v2394, %v2563
      %v2603 = vmul.f32 %v2395, %v2566
      %v2604 = vmul.f32 %v2396, %v2569
      %v2605 = vmul.f32 %v2397, %v2572
      %v2606 = vmul.f32 %v2398, %v2575
      %v2607 = vmul.f32 %v2399, %v2578
      %v2608 = vmul.f32 %v2400, %v2581
      %v2609 = vmul.f32 %v2401, %v2584
      %v2610 = vmul.f32 %v2402, %v2587
      %v2611 = vmul.f32 %v2403, %v2590
      %v2612 = vmul.f32 %v2404, %v2593
      %v2613 = vmul.f32 %v2405, %v2596
      %2630 = vrot.lane.b32.xlu0 %v2598, 127
      %v2631 = vpop.permute.xlu0 %2630
      %2632 = vrot.lane.b32.xlu0 %v2599, 127
      %v2633 = vpop.permute.xlu0 %2632
      %2634 = vrot.lane.b32.xlu0 %v2600, 127
      %v2635 = vpop.permute.xlu0 %2634
      %2636 = vrot.lane.b32.xlu0 %v2601, 127
      %v2637 = vpop.permute.xlu0 %2636
      %2638 = vrot.lane.b32.xlu0 %v2602, 127
      %v2639 = vpop.permute.xlu0 %2638
      %2640 = vrot.lane.b32.xlu0 %v2603, 127
      %v2641 = vpop.permute.xlu0 %2640
      %2642 = vrot.lane.b32.xlu0 %v2604, 127
      %v2643 = vpop.permute.xlu0 %2642
      %2644 = vrot.lane.b32.xlu0 %v2605, 127
      %v2645 = vpop.permute.xlu0 %2644
      %2646 = vrot.lane.b32.xlu0 %v2606, 127
      %v2647 = vpop.permute.xlu0 %2646
      %2648 = vrot.lane.b32.xlu0 %v2607, 127
      %v2649 = vpop.permute.xlu0 %2648
      %2650 = vrot.lane.b32.xlu0 %v2608, 127
      %v2651 = vpop.permute.xlu0 %2650
      %2652 = vrot.lane.b32.xlu0 %v2609, 127
      %v2653 = vpop.permute.xlu0 %2652
      %2654 = vrot.lane.b32.xlu0 %v2610, 127
      %v2655 = vpop.permute.xlu0 %2654
      %2656 = vrot.lane.b32.xlu0 %v2611, 127
      %v2657 = vpop.permute.xlu0 %2656
      %2658 = vrot.lane.b32.xlu0 %v2612, 127
      %v2659 = vpop.permute.xlu0 %2658
      %2660 = vrot.lane.b32.xlu0 %v2613, 127
      %v2661 = vpop.permute.xlu0 %2660
      %v2678 = vadd.f32 %v2502, %v2631
      %v2679 = vadd.f32 %v2503, %v2633
      %v2680 = vadd.f32 %v2504, %v2635
      %v2681 = vadd.f32 %v2505, %v2637
      %v2682 = vadd.f32 %v2506, %v2639
      %v2683 = vadd.f32 %v2507, %v2641
      %v2684 = vadd.f32 %v2508, %v2643
      %v2685 = vadd.f32 %v2509, %v2645
      %v2686 = vadd.f32 %v2510, %v2647
      %v2687 = vadd.f32 %v2511, %v2649
      %v2688 = vadd.f32 %v2512, %v2651
      %v2689 = vadd.f32 %v2513, %v2653
      %v2690 = vadd.f32 %v2514, %v2655
      %v2691 = vadd.f32 %v2515, %v2657
      %v2692 = vadd.f32 %v2516, %v2659
      %v2693 = vadd.f32 %v2517, %v2661
      %2694 = vrot.lane.b32.xlu0 %v2406, 126
      %v2695 = vpop.permute.xlu0 %2694
      %2696 = vrot.lane.b32.xlu0 %v2407, 126
      %v2697 = vpop.permute.xlu0 %2696
      %2698 = vrot.lane.b32.xlu0 %v2408, 126
      %v2699 = vpop.permute.xlu0 %2698
      %2700 = vrot.lane.b32.xlu0 %v2409, 126
      %v2701 = vpop.permute.xlu0 %2700
      %2702 = vrot.lane.b32.xlu0 %v2410, 126
      %v2703 = vpop.permute.xlu0 %2702
      %2704 = vrot.lane.b32.xlu0 %v2411, 126
      %v2705 = vpop.permute.xlu0 %2704
      %2706 = vrot.lane.b32.xlu0 %v2412, 126
      %v2707 = vpop.permute.xlu0 %2706
      %2708 = vrot.lane.b32.xlu0 %v2413, 126
      %v2709 = vpop.permute.xlu0 %2708
      %2710 = vrot.lane.b32.xlu0 %v2414, 126
      %v2711 = vpop.permute.xlu0 %2710
      %2712 = vrot.lane.b32.xlu0 %v2415, 126
      %v2713 = vpop.permute.xlu0 %2712
      %2714 = vrot.lane.b32.xlu0 %v2416, 126
      %v2715 = vpop.permute.xlu0 %2714
      %2716 = vrot.lane.b32.xlu0 %v2417, 126
      %v2717 = vpop.permute.xlu0 %2716
      %2718 = vrot.lane.b32.xlu0 %v2418, 126
      %v2719 = vpop.permute.xlu0 %2718
      %2720 = vrot.lane.b32.xlu0 %v2419, 126
      %v2721 = vpop.permute.xlu0 %2720
      %2722 = vrot.lane.b32.xlu0 %v2420, 126
      %v2723 = vpop.permute.xlu0 %2722
      %2724 = vrot.lane.b32.xlu0 %v2421, 126
      %v2725 = vpop.permute.xlu0 %2724
      %s2726 = vtos %v2695
      %v2727 = vstv %s2726
      %s2729 = vtos %v2697
      %v2730 = vstv %s2729
      %s2732 = vtos %v2699
      %v2733 = vstv %s2732
      %s2735 = vtos %v2701
      %v2736 = vstv %s2735
      %s2738 = vtos %v2703
      %v2739 = vstv %s2738
      %s2741 = vtos %v2705
      %v2742 = vstv %s2741
      %s2744 = vtos %v2707
      %v2745 = vstv %s2744
      %s2747 = vtos %v2709
      %v2748 = vstv %s2747
      %s2750 = vtos %v2711
      %v2751 = vstv %s2750
      %s2753 = vtos %v2713
      %v2754 = vstv %s2753
      %s2756 = vtos %v2715
      %v2757 = vstv %s2756
      %s2759 = vtos %v2717
      %v2760 = vstv %s2759
      %s2762 = vtos %v2719
      %v2763 = vstv %s2762
      %s2765 = vtos %v2721
      %v2766 = vstv %s2765
      %s2768 = vtos %v2723
      %v2769 = vstv %s2768
      %s2771 = vtos %v2725
      %v2772 = vstv %s2771
      %v2774 = vmul.f32 %v2390, %v2727
      %v2775 = vmul.f32 %v2391, %v2730
      %v2776 = vmul.f32 %v2392, %v2733
      %v2777 = vmul.f32 %v2393, %v2736
      %v2778 = vmul.f32 %v2394, %v2739
      %v2779 = vmul.f32 %v2395, %v2742
      %v2780 = vmul.f32 %v2396, %v2745
      %v2781 = vmul.f32 %v2397, %v2748
      %v2782 = vmul.f32 %v2398, %v2751
      %v2783 = vmul.f32 %v2399, %v2754
      %v2784 = vmul.f32 %v2400, %v2757
      %v2785 = vmul.f32 %v2401, %v2760
      %v2786 = vmul.f32 %v2402, %v2763
      %v2787 = vmul.f32 %v2403, %v2766
      %v2788 = vmul.f32 %v2404, %v2769
      %v2789 = vmul.f32 %v2405, %v2772
      %2806 = vrot.lane.b32.xlu0 %v2774, 126
      %v2807 = vpop.permute.xlu0 %2806
      %2808 = vrot.lane.b32.xlu0 %v2775, 126
      %v2809 = vpop.permute.xlu0 %2808
      %2810 = vrot.lane.b32.xlu0 %v2776, 126
      %v2811 = vpop.permute.xlu0 %2810
      %2812 = vrot.lane.b32.xlu0 %v2777, 126
      %v2813 = vpop.permute.xlu0 %2812
      %2814 = vrot.lane.b32.xlu0 %v2778, 126
      %v2815 = vpop.permute.xlu0 %2814
      %2816 = vrot.lane.b32.xlu0 %v2779, 126
      %v2817 = vpop.permute.xlu0 %2816
      %2818 = vrot.lane.b32.xlu0 %v2780, 126
      %v2819 = vpop.permute.xlu0 %2818
      %2820 = vrot.lane.b32.xlu0 %v2781, 126
      %v2821 = vpop.permute.xlu0 %2820
      %2822 = vrot.lane.b32.xlu0 %v2782, 126
      %v2823 = vpop.permute.xlu0 %2822
      %2824 = vrot.lane.b32.xlu0 %v2783, 126
      %v2825 = vpop.permute.xlu0 %2824
      %2826 = vrot.lane.b32.xlu0 %v2784, 126
      %v2827 = vpop.permute.xlu0 %2826
      %2828 = vrot.lane.b32.xlu0 %v2785, 126
      %v2829 = vpop.permute.xlu0 %2828
      %2830 = vrot.lane.b32.xlu0 %v2786, 126
      %v2831 = vpop.permute.xlu0 %2830
      %2832 = vrot.lane.b32.xlu0 %v2787, 126
      %v2833 = vpop.permute.xlu0 %2832
      %2834 = vrot.lane.b32.xlu0 %v2788, 126
      %v2835 = vpop.permute.xlu0 %2834
      %2836 = vrot.lane.b32.xlu0 %v2789, 126
      %v2837 = vpop.permute.xlu0 %2836
      %v2854 = vadd.f32 %v2678, %v2807
      %v2855 = vadd.f32 %v2679, %v2809
      %v2856 = vadd.f32 %v2680, %v2811
      %v2857 = vadd.f32 %v2681, %v2813
      %v2858 = vadd.f32 %v2682, %v2815
      %v2859 = vadd.f32 %v2683, %v2817
      %v2860 = vadd.f32 %v2684, %v2819
      %v2861 = vadd.f32 %v2685, %v2821
      %v2862 = vadd.f32 %v2686, %v2823
      %v2863 = vadd.f32 %v2687, %v2825
      %v2864 = vadd.f32 %v2688, %v2827
      %v2865 = vadd.f32 %v2689, %v2829
      %v2866 = vadd.f32 %v2690, %v2831
      %v2867 = vadd.f32 %v2691, %v2833
      %v2868 = vadd.f32 %v2692, %v2835
      %v2869 = vadd.f32 %v2693, %v2837
      %v2870 = vld [vmem:[#allocation2 + $0xa] sm:$0xff]
      %v2871 = vld [vmem:[#allocation2 + $0x22] sm:$0xff]
      %v2872 = vld [vmem:[#allocation2 + $0x3a] sm:$0xff]
      %v2873 = vld [vmem:[#allocation2 + $0x52] sm:$0xff]
      %v2874 = vld [vmem:[#allocation2 + $0x6a] sm:$0xff]
      %v2875 = vld [vmem:[#allocation2 + $0x82] sm:$0xff]
      %v2876 = vld [vmem:[#allocation2 + $0x9a] sm:$0xff]
      %v2877 = vld [vmem:[#allocation2 + $0xb2] sm:$0xff]
      %v2878 = vld [vmem:[#allocation2 + $0xca] sm:$0xff]
      %v2879 = vld [vmem:[#allocation2 + $0xe2] sm:$0xff]
      %v2880 = vld [vmem:[#allocation2 + $0xfa] sm:$0xff]
      %v2881 = vld [vmem:[#allocation2 + $0x112] sm:$0xff]
      %v2882 = vld [vmem:[#allocation2 + $0x12a] sm:$0xff]
      %v2883 = vld [vmem:[#allocation2 + $0x142] sm:$0xff]
      %v2884 = vld [vmem:[#allocation2 + $0x15a] sm:$0xff]
      %v2885 = vld [vmem:[#allocation2 + $0x172] sm:$0xff]
      %v2886 = vld [vmem:[%s197 + $0x2] sm:$0x1]
      %v2887 = vld [vmem:[%s197 + $0x6] sm:$0x1]
      %v2888 = vld [vmem:[%s197 + $0xa] sm:$0x1]
      %v2889 = vld [vmem:[%s197 + $0xe] sm:$0x1]
      %v2890 = vld [vmem:[%s197 + $0x12] sm:$0x1]
      %v2891 = vld [vmem:[%s197 + $0x16] sm:$0x1]
      %v2892 = vld [vmem:[%s197 + $0x1a] sm:$0x1]
      %v2893 = vld [vmem:[%s197 + $0x1e] sm:$0x1]
      %v2894 = vld [vmem:[%s197 + $0x22] sm:$0x1]
      %v2895 = vld [vmem:[%s197 + $0x26] sm:$0x1]
      %v2896 = vld [vmem:[%s197 + $0x2a] sm:$0x1]
      %v2897 = vld [vmem:[%s197 + $0x2e] sm:$0x1]
      %v2898 = vld [vmem:[%s197 + $0x32] sm:$0x1]
      %v2899 = vld [vmem:[%s197 + $0x36] sm:$0x1]
      %v2900 = vld [vmem:[%s197 + $0x3a] sm:$0x1]
      %v2901 = vld [vmem:[%s197 + $0x3e] sm:$0x1]
      %s2903 = vtos %v2886
      %v2904 = vstv %s2903
      %s2907 = vtos %v2887
      %v2908 = vstv %s2907
      %s2911 = vtos %v2888
      %v2912 = vstv %s2911
      %s2915 = vtos %v2889
      %v2916 = vstv %s2915
      %s2919 = vtos %v2890
      %v2920 = vstv %s2919
      %s2923 = vtos %v2891
      %v2924 = vstv %s2923
      %s2927 = vtos %v2892
      %v2928 = vstv %s2927
      %s2931 = vtos %v2893
      %v2932 = vstv %s2931
      %s2935 = vtos %v2894
      %v2936 = vstv %s2935
      %s2939 = vtos %v2895
      %v2940 = vstv %s2939
      %s2943 = vtos %v2896
      %v2944 = vstv %s2943
      %s2947 = vtos %v2897
      %v2948 = vstv %s2947
      %s2951 = vtos %v2898
      %v2952 = vstv %s2951
      %s2955 = vtos %v2899
      %v2956 = vstv %s2955
      %s2959 = vtos %v2900
      %v2960 = vstv %s2959
      %s2963 = vtos %v2901
      %v2964 = vstv %s2963
      %v2966 = vmul.f32 %v2870, %v2904
      %v2967 = vmul.f32 %v2871, %v2908
      %v2968 = vmul.f32 %v2872, %v2912
      %v2969 = vmul.f32 %v2873, %v2916
      %v2970 = vmul.f32 %v2874, %v2920
      %v2971 = vmul.f32 %v2875, %v2924
      %v2972 = vmul.f32 %v2876, %v2928
      %v2973 = vmul.f32 %v2877, %v2932
      %v2974 = vmul.f32 %v2878, %v2936
      %v2975 = vmul.f32 %v2879, %v2940
      %v2976 = vmul.f32 %v2880, %v2944
      %v2977 = vmul.f32 %v2881, %v2948
      %v2978 = vmul.f32 %v2882, %v2952
      %v2979 = vmul.f32 %v2883, %v2956
      %v2980 = vmul.f32 %v2884, %v2960
      %v2981 = vmul.f32 %v2885, %v2964
      %v2982 = vadd.f32 %v2854, %v2966
      %v2983 = vadd.f32 %v2855, %v2967
      %v2984 = vadd.f32 %v2856, %v2968
      %v2985 = vadd.f32 %v2857, %v2969
      %v2986 = vadd.f32 %v2858, %v2970
      %v2987 = vadd.f32 %v2859, %v2971
      %v2988 = vadd.f32 %v2860, %v2972
      %v2989 = vadd.f32 %v2861, %v2973
      %v2990 = vadd.f32 %v2862, %v2974
      %v2991 = vadd.f32 %v2863, %v2975
      %v2992 = vadd.f32 %v2864, %v2976
      %v2993 = vadd.f32 %v2865, %v2977
      %v2994 = vadd.f32 %v2866, %v2978
      %v2995 = vadd.f32 %v2867, %v2979
      %v2996 = vadd.f32 %v2868, %v2980
      %v2997 = vadd.f32 %v2869, %v2981
      %2998 = vrot.lane.b32.xlu0 %v2886, 127
      %v2999 = vpop.permute.xlu0 %2998
      %3000 = vrot.lane.b32.xlu0 %v2887, 127
      %v3001 = vpop.permute.xlu0 %3000
      %3002 = vrot.lane.b32.xlu0 %v2888, 127
      %v3003 = vpop.permute.xlu0 %3002
      %3004 = vrot.lane.b32.xlu0 %v2889, 127
      %v3005 = vpop.permute.xlu0 %3004
      %3006 = vrot.lane.b32.xlu0 %v2890, 127
      %v3007 = vpop.permute.xlu0 %3006
      %3008 = vrot.lane.b32.xlu0 %v2891, 127
      %v3009 = vpop.permute.xlu0 %3008
      %3010 = vrot.lane.b32.xlu0 %v2892, 127
      %v3011 = vpop.permute.xlu0 %3010
      %3012 = vrot.lane.b32.xlu0 %v2893, 127
      %v3013 = vpop.permute.xlu0 %3012
      %3014 = vrot.lane.b32.xlu0 %v2894, 127
      %v3015 = vpop.permute.xlu0 %3014
      %3016 = vrot.lane.b32.xlu0 %v2895, 127
      %v3017 = vpop.permute.xlu0 %3016
      %3018 = vrot.lane.b32.xlu0 %v2896, 127
      %v3019 = vpop.permute.xlu0 %3018
      %3020 = vrot.lane.b32.xlu0 %v2897, 127
      %v3021 = vpop.permute.xlu0 %3020
      %3022 = vrot.lane.b32.xlu0 %v2898, 127
      %v3023 = vpop.permute.xlu0 %3022
      %3024 = vrot.lane.b32.xlu0 %v2899, 127
      %v3025 = vpop.permute.xlu0 %3024
      %3026 = vrot.lane.b32.xlu0 %v2900, 127
      %v3027 = vpop.permute.xlu0 %3026
      %3028 = vrot.lane.b32.xlu0 %v2901, 127
      %v3029 = vpop.permute.xlu0 %3028
      %s3030 = vtos %v2999
      %v3031 = vstv %s3030
      %s3033 = vtos %v3001
      %v3034 = vstv %s3033
      %s3036 = vtos %v3003
      %v3037 = vstv %s3036
      %s3039 = vtos %v3005
      %v3040 = vstv %s3039
      %s3042 = vtos %v3007
      %v3043 = vstv %s3042
      %s3045 = vtos %v3009
      %v3046 = vstv %s3045
      %s3048 = vtos %v3011
      %v3049 = vstv %s3048
      %s3051 = vtos %v3013
      %v3052 = vstv %s3051
      %s3054 = vtos %v3015
      %v3055 = vstv %s3054
      %s3057 = vtos %v3017
      %v3058 = vstv %s3057
      %s3060 = vtos %v3019
      %v3061 = vstv %s3060
      %s3063 = vtos %v3021
      %v3064 = vstv %s3063
      %s3066 = vtos %v3023
      %v3067 = vstv %s3066
      %s3069 = vtos %v3025
      %v3070 = vstv %s3069
      %s3072 = vtos %v3027
      %v3073 = vstv %s3072
      %s3075 = vtos %v3029
      %v3076 = vstv %s3075
      %v3078 = vmul.f32 %v2870, %v3031
      %v3079 = vmul.f32 %v2871, %v3034
      %v3080 = vmul.f32 %v2872, %v3037
      %v3081 = vmul.f32 %v2873, %v3040
      %v3082 = vmul.f32 %v2874, %v3043
      %v3083 = vmul.f32 %v2875, %v3046
      %v3084 = vmul.f32 %v2876, %v3049
      %v3085 = vmul.f32 %v2877, %v3052
      %v3086 = vmul.f32 %v2878, %v3055
      %v3087 = vmul.f32 %v2879, %v3058
      %v3088 = vmul.f32 %v2880, %v3061
      %v3089 = vmul.f32 %v2881, %v3064
      %v3090 = vmul.f32 %v2882, %v3067
      %v3091 = vmul.f32 %v2883, %v3070
      %v3092 = vmul.f32 %v2884, %v3073
      %v3093 = vmul.f32 %v2885, %v3076
      %3110 = vrot.lane.b32.xlu0 %v3078, 127
      %v3111 = vpop.permute.xlu0 %3110
      %3112 = vrot.lane.b32.xlu0 %v3079, 127
      %v3113 = vpop.permute.xlu0 %3112
      %3114 = vrot.lane.b32.xlu0 %v3080, 127
      %v3115 = vpop.permute.xlu0 %3114
      %3116 = vrot.lane.b32.xlu0 %v3081, 127
      %v3117 = vpop.permute.xlu0 %3116
      %3118 = vrot.lane.b32.xlu0 %v3082, 127
      %v3119 = vpop.permute.xlu0 %3118
      %3120 = vrot.lane.b32.xlu0 %v3083, 127
      %v3121 = vpop.permute.xlu0 %3120
      %3122 = vrot.lane.b32.xlu0 %v3084, 127
      %v3123 = vpop.permute.xlu0 %3122
      %3124 = vrot.lane.b32.xlu0 %v3085, 127
      %v3125 = vpop.permute.xlu0 %3124
      %3126 = vrot.lane.b32.xlu0 %v3086, 127
      %v3127 = vpop.permute.xlu0 %3126
      %3128 = vrot.lane.b32.xlu0 %v3087, 127
      %v3129 = vpop.permute.xlu0 %3128
      %3130 = vrot.lane.b32.xlu0 %v3088, 127
      %v3131 = vpop.permute.xlu0 %3130
      %3132 = vrot.lane.b32.xlu0 %v3089, 127
      %v3133 = vpop.permute.xlu0 %3132
      %3134 = vrot.lane.b32.xlu0 %v3090, 127
      %v3135 = vpop.permute.xlu0 %3134
      %3136 = vrot.lane.b32.xlu0 %v3091, 127
      %v3137 = vpop.permute.xlu0 %3136
      %3138 = vrot.lane.b32.xlu0 %v3092, 127
      %v3139 = vpop.permute.xlu0 %3138
      %3140 = vrot.lane.b32.xlu0 %v3093, 127
      %v3141 = vpop.permute.xlu0 %3140
      %v3158 = vadd.f32 %v2982, %v3111
      %v3159 = vadd.f32 %v2983, %v3113
      %v3160 = vadd.f32 %v2984, %v3115
      %v3161 = vadd.f32 %v2985, %v3117
      %v3162 = vadd.f32 %v2986, %v3119
      %v3163 = vadd.f32 %v2987, %v3121
      %v3164 = vadd.f32 %v2988, %v3123
      %v3165 = vadd.f32 %v2989, %v3125
      %v3166 = vadd.f32 %v2990, %v3127
      %v3167 = vadd.f32 %v2991, %v3129
      %v3168 = vadd.f32 %v2992, %v3131
      %v3169 = vadd.f32 %v2993, %v3133
      %v3170 = vadd.f32 %v2994, %v3135
      %v3171 = vadd.f32 %v2995, %v3137
      %v3172 = vadd.f32 %v2996, %v3139
      %v3173 = vadd.f32 %v2997, %v3141
      %3174 = vrot.lane.b32.xlu0 %v2886, 126
      %v3175 = vpop.permute.xlu0 %3174
      %3176 = vrot.lane.b32.xlu0 %v2887, 126
      %v3177 = vpop.permute.xlu0 %3176
      %3178 = vrot.lane.b32.xlu0 %v2888, 126
      %v3179 = vpop.permute.xlu0 %3178
      %3180 = vrot.lane.b32.xlu0 %v2889, 126
      %v3181 = vpop.permute.xlu0 %3180
      %3182 = vrot.lane.b32.xlu0 %v2890, 126
      %v3183 = vpop.permute.xlu0 %3182
      %3184 = vrot.lane.b32.xlu0 %v2891, 126
      %v3185 = vpop.permute.xlu0 %3184
      %3186 = vrot.lane.b32.xlu0 %v2892, 126
      %v3187 = vpop.permute.xlu0 %3186
      %3188 = vrot.lane.b32.xlu0 %v2893, 126
      %v3189 = vpop.permute.xlu0 %3188
      %3190 = vrot.lane.b32.xlu0 %v2894, 126
      %v3191 = vpop.permute.xlu0 %3190
      %3192 = vrot.lane.b32.xlu0 %v2895, 126
      %v3193 = vpop.permute.xlu0 %3192
      %3194 = vrot.lane.b32.xlu0 %v2896, 126
      %v3195 = vpop.permute.xlu0 %3194
      %3196 = vrot.lane.b32.xlu0 %v2897, 126
      %v3197 = vpop.permute.xlu0 %3196
      %3198 = vrot.lane.b32.xlu0 %v2898, 126
      %v3199 = vpop.permute.xlu0 %3198
      %3200 = vrot.lane.b32.xlu0 %v2899, 126
      %v3201 = vpop.permute.xlu0 %3200
      %3202 = vrot.lane.b32.xlu0 %v2900, 126
      %v3203 = vpop.permute.xlu0 %3202
      %3204 = vrot.lane.b32.xlu0 %v2901, 126
      %v3205 = vpop.permute.xlu0 %3204
      %s3206 = vtos %v3175
      %v3207 = vstv %s3206
      %s3209 = vtos %v3177
      %v3210 = vstv %s3209
      %s3212 = vtos %v3179
      %v3213 = vstv %s3212
      %s3215 = vtos %v3181
      %v3216 = vstv %s3215
      %s3218 = vtos %v3183
      %v3219 = vstv %s3218
      %s3221 = vtos %v3185
      %v3222 = vstv %s3221
      %s3224 = vtos %v3187
      %v3225 = vstv %s3224
      %s3227 = vtos %v3189
      %v3228 = vstv %s3227
      %s3230 = vtos %v3191
      %v3231 = vstv %s3230
      %s3233 = vtos %v3193
      %v3234 = vstv %s3233
      %s3236 = vtos %v3195
      %v3237 = vstv %s3236
      %s3239 = vtos %v3197
      %v3240 = vstv %s3239
      %s3242 = vtos %v3199
      %v3243 = vstv %s3242
      %s3245 = vtos %v3201
      %v3246 = vstv %s3245
      %s3248 = vtos %v3203
      %v3249 = vstv %s3248
      %s3251 = vtos %v3205
      %v3252 = vstv %s3251
      %v3254 = vmul.f32 %v2870, %v3207
      %v3255 = vmul.f32 %v2871, %v3210
      %v3256 = vmul.f32 %v2872, %v3213
      %v3257 = vmul.f32 %v2873, %v3216
      %v3258 = vmul.f32 %v2874, %v3219
      %v3259 = vmul.f32 %v2875, %v3222
      %v3260 = vmul.f32 %v2876, %v3225
      %v3261 = vmul.f32 %v2877, %v3228
      %v3262 = vmul.f32 %v2878, %v3231
      %v3263 = vmul.f32 %v2879, %v3234
      %v3264 = vmul.f32 %v2880, %v3237
      %v3265 = vmul.f32 %v2881, %v3240
      %v3266 = vmul.f32 %v2882, %v3243
      %v3267 = vmul.f32 %v2883, %v3246
      %v3268 = vmul.f32 %v2884, %v3249
      %v3269 = vmul.f32 %v2885, %v3252
      %3286 = vrot.lane.b32.xlu0 %v3254, 126
      %v3287 = vpop.permute.xlu0 %3286
      %3288 = vrot.lane.b32.xlu0 %v3255, 126
      %v3289 = vpop.permute.xlu0 %3288
      %3290 = vrot.lane.b32.xlu0 %v3256, 126
      %v3291 = vpop.permute.xlu0 %3290
      %3292 = vrot.lane.b32.xlu0 %v3257, 126
      %v3293 = vpop.permute.xlu0 %3292
      %3294 = vrot.lane.b32.xlu0 %v3258, 126
      %v3295 = vpop.permute.xlu0 %3294
      %3296 = vrot.lane.b32.xlu0 %v3259, 126
      %v3297 = vpop.permute.xlu0 %3296
      %3298 = vrot.lane.b32.xlu0 %v3260, 126
      %v3299 = vpop.permute.xlu0 %3298
      %3300 = vrot.lane.b32.xlu0 %v3261, 126
      %v3301 = vpop.permute.xlu0 %3300
      %3302 = vrot.lane.b32.xlu0 %v3262, 126
      %v3303 = vpop.permute.xlu0 %3302
      %3304 = vrot.lane.b32.xlu0 %v3263, 126
      %v3305 = vpop.permute.xlu0 %3304
      %3306 = vrot.lane.b32.xlu0 %v3264, 126
      %v3307 = vpop.permute.xlu0 %3306
      %3308 = vrot.lane.b32.xlu0 %v3265, 126
      %v3309 = vpop.permute.xlu0 %3308
      %3310 = vrot.lane.b32.xlu0 %v3266, 126
      %v3311 = vpop.permute.xlu0 %3310
      %3312 = vrot.lane.b32.xlu0 %v3267, 126
      %v3313 = vpop.permute.xlu0 %3312
      %3314 = vrot.lane.b32.xlu0 %v3268, 126
      %v3315 = vpop.permute.xlu0 %3314
      %3316 = vrot.lane.b32.xlu0 %v3269, 126
      %v3317 = vpop.permute.xlu0 %3316
      %v3334 = vadd.f32 %v3158, %v3287
      %v3335 = vadd.f32 %v3159, %v3289
      %v3336 = vadd.f32 %v3160, %v3291
      %v3337 = vadd.f32 %v3161, %v3293
      %v3338 = vadd.f32 %v3162, %v3295
      %v3339 = vadd.f32 %v3163, %v3297
      %v3340 = vadd.f32 %v3164, %v3299
      %v3341 = vadd.f32 %v3165, %v3301
      %v3342 = vadd.f32 %v3166, %v3303
      %v3343 = vadd.f32 %v3167, %v3305
      %v3344 = vadd.f32 %v3168, %v3307
      %v3345 = vadd.f32 %v3169, %v3309
      %v3346 = vadd.f32 %v3170, %v3311
      %v3347 = vadd.f32 %v3171, %v3313
      %v3348 = vadd.f32 %v3172, %v3315
      %v3349 = vadd.f32 %v3173, %v3317
      %3350 = vst.msk [vmem:[%s208 + $0x8] sm:$0xff] %vm1893, %v3334
      %3351 = vst.msk [vmem:[%s208 + $0x18] sm:$0xff] %vm1893, %v3335
      %3352 = vst.msk [vmem:[%s208 + $0x28] sm:$0xff] %vm1893, %v3336
      %3353 = vst.msk [vmem:[%s208 + $0x38] sm:$0xff] %vm1893, %v3337
      %3354 = vst.msk [vmem:[%s208 + $0x48] sm:$0xff] %vm1893, %v3338
      %3355 = vst.msk [vmem:[%s208 + $0x58] sm:$0xff] %vm1893, %v3339
      %3356 = vst.msk [vmem:[%s208 + $0x68] sm:$0xff] %vm1893, %v3340
      %3357 = vst.msk [vmem:[%s208 + $0x78] sm:$0xff] %vm1893, %v3341
      %3358 = vst.msk [vmem:[%s208 + $0x88] sm:$0xff] %vm1893, %v3342
      %3359 = vst.msk [vmem:[%s208 + $0x98] sm:$0xff] %vm1893, %v3343
      %3360 = vst.msk [vmem:[%s208 + $0xa8] sm:$0xff] %vm1893, %v3344
      %3361 = vst.msk [vmem:[%s208 + $0xb8] sm:$0xff] %vm1893, %v3345
      %3362 = vst.msk [vmem:[%s208 + $0xc8] sm:$0xff] %vm1893, %v3346
      %3363 = vst.msk [vmem:[%s208 + $0xd8] sm:$0xff] %vm1893, %v3347
      %3364 = vst.msk [vmem:[%s208 + $0xe8] sm:$0xff] %vm1893, %v3348
      %3365 = vst.msk [vmem:[%s208 + $0xf8] sm:$0xff] %vm1893, %v3349
      %s3366 = smul.u32 16, %s18
      %p3367 = scmp.lt.s32.totalorder %s17, 0
      %s3368 = scalar_select %p3367, %s17, 0
      %p3369 = scmp.lt.s32.totalorder %s3366, 143
      %s3370 = scalar_select %p3369, %s3366, 143
      %s3371 = smul.addr %s3370, 2
      %s3372 = smul.addr %s3368, 288
      %s3373 = sadd.s32 %s3371, %s3372
      %s3374 = smul.addr %s3373, 8
      %s3375 = scalar_lea.vmem %s2, %s3374
      // Predicated region
      $region29: #{tpu_custom_call.1} parent=27 // pred_check
        %p3376 = pneg %p99
      $region30: #{tpu_custom_call.1} parent=27 // pred_check_branch
        %3378 = sbr.rel (%p3376) target = $region32
      $region31: #{tpu_custom_call.1} parent=27 // pred_region
        %s3379 = smul.u32 16, %s18
      $region32: #{tpu_custom_call.1} parent=27 // pred_fallthru
        _
    $region28: #{tpu_custom_call.1} parent=5 // pred_fallthru
      _
    %p3380 = scmp.le.s32.totalorder 2, %s8
    // Predicated region
    $region33: #{tpu_custom_call.1} parent=5 // pred_check
      %p3381 = pneg %p3380
    $region34: #{tpu_custom_call.1} parent=5 // pred_check_branch
      %3383 = sbr.rel (%p3381) target = $region36
    $region35: #{tpu_custom_call.1} parent=5 // pred_region
      %s3384 = ssub.s32 %s8, 2
      // Predicated region
      $region37: #{tpu_custom_call.1} parent=35 // pred_check
        %p3385 = pneg %p105
      $region38: #{tpu_custom_call.1} parent=35 // pred_check_branch
        %3387 = sbr.rel (%p3385) target = $region40
      $region39: #{tpu_custom_call.1} parent=35 // pred_region
        %s3388 = smul.u32 16, %s20
        %p3389 = scmp.lt.s32.totalorder %s19, 0
        %s3390 = scalar_select %p3389, %s19, 0
        %p3391 = scmp.lt.s32.totalorder %s3388, 143
        %s3392 = scalar_select %p3391, %s3388, 143
        %s3393 = smul.addr %s3392, 2
        %s3394 = smul.addr %s3390, 288
        %s3395 = sadd.s32 %s3393, %s3394
        %s3396 = smul.addr %s3395, 8
        %s3397 = scalar_lea.vmem %s2, %s3396
      $region40: #{tpu_custom_call.1} parent=35 // pred_fallthru
        _
    $region36: #{tpu_custom_call.1} parent=5 // pred_fallthru
      _
  $region6: #{tpu_custom_call.1} parent=0 // loop_footer
    %s12 = sadd.s32 1, %s8
  $region7: #{tpu_custom_call.1} parent=0 // loop_footer_branch
    %7 = sbr.rel target = $region3
  $region8: #{tpu_custom_call.1} parent=0 // loop_exit
    _

</llo_original>
